<compile_context>
chip_gen: v7x
topology: tpu7x:2x2x1
jax: 0.10.0
libtpu: 0.0.40
codegen_flags: <defaults>
</compile_context>

<pallas_src>
import functools

import numpy as np
import jax
import jax.numpy as jnp
from jax.experimental import pallas as pl
from jax.experimental.pallas import tpu as pltpu


# ----------------------------- kernel helpers -----------------------------

def _relu(x):
    return jnp.maximum(x, 0.0)


def _matmul(x, w, cast_act_bf16):
    # Weights are pre-cast in the wrapper when bf16 matmuls are requested; only
    # the activation is cast in-kernel (JAX does not CSE casts across loop
    # iterations, so casting resident weights per-iteration would be pure VPU
    # overhead, worst on v5e which has no bf16 VALU).
    if cast_act_bf16:
        x = x.astype(jnp.bfloat16)
    return jnp.dot(x, w, preferred_element_type=jnp.float32)


def _layernorm(x, gamma, beta, eps=1e-5):
    # Full-width LayerNorm (torch semantics: biased variance, eps inside rsqrt).
    # One sweep (sum + sum-of-squares); variance clamped >= 0 so catastrophic
    # cancellation can never feed a negative value into rsqrt.
    inv_d = 1.0 / float(x.shape[-1])
    s1 = jnp.sum(x, axis=-1, keepdims=True)
    s2 = jnp.sum(x * x, axis=-1, keepdims=True)
    mu = s1 * inv_d
    var = jnp.maximum(s2 * inv_d - mu * mu, 0.0)
    return (x - mu) * jax.lax.rsqrt(var + eps) * gamma + beta


def _repeat_linear_relu(x, w, b_full, n_layers, cast_act_bf16):
    # Weight-tied layer applied n_layers times.  Bias is pre-broadcast by the
    # caller (hoisted out of the loop).  Python-unroll small static layer counts
    # (LLO scheduling visibility); partially-unrolled fori_loop for very deep
    # stacks to bound live ranges / code size.
    def body(h):
        return _relu(_matmul(h, w, cast_act_bf16) + b_full)

    if n_layers <= 8:
        for _ in range(n_layers):
            x = body(x)
        return x
    return jax.lax.fori_loop(0, n_layers, lambda _, h: body(h), x, unroll=2)


# ------------------------------- the kernel -------------------------------

def _contrastive_kernel(n_layers_feature, n_layers_cls, fuse_tail, use_bf16, widths,
                        x1_ref, x2_ref, vec_ref,
                        w_in_ref, w_fcn_ref, w_out_ref,
                        w_inc_ref, w_hc_ref, w_oc_ref,
                        out_ref):
    tb = x1_ref.shape[0]

    # ---- packed (1, w) parameter rows (gamma/beta/bias), one operand ----
    cursor = [0]

    def next_vec():
        r = cursor[0]
        cursor[0] += 1
        return vec_ref[r:r + 1, 0:widths[r]]          # (1, w), static slice

    def branch_head(x_ref, w_in):
        g_in, b_in, bb_in, g_h, b_h = (next_vec() for _ in range(5))
        x = _layernorm(x_ref[...], g_in, b_in)         # input_norm
        x = _matmul(x, w_in, use_bf16) + bb_in         # input_layer
        return _relu(_layernorm(x, g_h, b_h))          # hidden_norm + ReLU

    # ------------- Siamese feature extractors (per-branch heads) -------------
    h1 = branch_head(x1_ref, w_in_ref[0])
    h2 = branch_head(x2_ref, w_in_ref[1])

    if fuse_tail:
        # Small widths: fuse both branches' weight-tied loop + output layer into
        # one matmul chain via block-diagonal weights on the lane-concatenated
        # activations (gated in the wrapper to one MXU pass).
        b_fcn = next_vec()
        b_out = next_vec()
        h = jnp.concatenate([h1, h2], axis=-1)                         # (tb, 2*d_h)
        b_fcn_full = jnp.broadcast_to(b_fcn, (tb, b_fcn.shape[-1]))    # hoisted
        h = _repeat_linear_relu(h, w_fcn_ref[...], b_fcn_full,
                                n_layers_feature, use_bf16)
        e = _relu(_matmul(h, w_out_ref[...], use_bf16) + b_out)        # [emb1|emb2]
    else:
        # Wide branches: run the two chains separately on per-branch weights
        # (block-diagonal zeros would waste up to 2x MXU passes past one tile).
        b_f1, b_f2, b_o1, b_o2 = (next_vec() for _ in range(4))
        b_f1_full = jnp.broadcast_to(b_f1, (tb, b_f1.shape[-1]))
        b_f2_full = jnp.broadcast_to(b_f2, (tb, b_f2.shape[-1]))
        h1 = _repeat_linear_relu(h1, w_fcn_ref[0], b_f1_full,
                                 n_layers_feature, use_bf16)
        h2 = _repeat_linear_relu(h2, w_fcn_ref[1], b_f2_full,
                                 n_layers_feature, use_bf16)
        e1 = _relu(_matmul(h1, w_out_ref[0], use_bf16) + b_o1)
        e2 = _relu(_matmul(h2, w_out_ref[1], use_bf16) + b_o2)
        e = jnp.concatenate([e1, e2], axis=-1)                         # [emb1|emb2]

    # ------------------------------ classifier -------------------------------
    b_inc, g_c, bt_c, b_hc, b_oc = (next_vec() for _ in range(5))
    x = _matmul(e, w_inc_ref[...], use_bf16) + b_inc                   # input_layer
    x = _relu(_layernorm(x, g_c, bt_c))                                # "batchnorm" (LayerNorm)
    b_hc_full = jnp.broadcast_to(b_hc, (tb, b_hc.shape[-1]))           # hoisted
    x = _repeat_linear_relu(x, w_hc_ref[...], b_hc_full, n_layers_cls, use_bf16)
    x = _matmul(x, w_oc_ref[...], use_bf16) + b_oc                     # output (lane-padded)
    out_ref[...] = jax.nn.sigmoid(x).astype(out_ref.dtype)             # lane-dense store


# ------------------------------ param setup -------------------------------

def _torch_linear_init(key, fan_in, fan_out):
    # Deterministic init matching torch.nn.Linear default (uniform +-1/sqrt(fan_in)),
    # already transposed to (in, out).
    kw, kb = jax.random.split(key)
    bound = 1.0 / jnp.sqrt(jnp.float32(fan_in))
    w = jax.random.uniform(kw, (fan_in, fan_out), jnp.float32, -bound, bound)
    b = jax.random.uniform(kb, (1, fan_out), jnp.float32, -bound, bound)
    return w, b


def make_feature_extractor_params(key, dim_input, dim_hidden, dim_output):
    k1, k2, k3 = jax.random.split(key, 3)
    g_in = jnp.ones((1, dim_input), jnp.float32)
    b_in = jnp.zeros((1, dim_input), jnp.float32)
    w_in, bb_in = _torch_linear_init(k1, dim_input, dim_hidden)
    g_h = jnp.ones((1, dim_hidden), jnp.float32)
    b_h = jnp.zeros((1, dim_hidden), jnp.float32)
    w_fcn, b_fcn = _torch_linear_init(k2, dim_hidden, dim_hidden)
    w_out, b_out = _torch_linear_init(k3, dim_hidden, dim_output)
    return [g_in, b_in, w_in, bb_in, g_h, b_h, w_fcn, b_fcn, w_out, b_out]


def make_classifier_params(key, dim_output_feature, dim_hidden_cls, dim_output_cls):
    k1, k2, k3 = jax.random.split(key, 3)
    w_in, b_in = _torch_linear_init(k1, 2 * dim_output_feature, dim_hidden_cls)
    g = jnp.ones((1, dim_hidden_cls), jnp.float32)
    bt = jnp.zeros((1, dim_hidden_cls), jnp.float32)
    w_h, b_h = _torch_linear_init(k2, dim_hidden_cls, dim_hidden_cls)
    w_o, b_o = _torch_linear_init(k3, dim_hidden_cls, dim_output_cls)
    return [w_in, b_in, g, bt, w_h, b_h, w_o, b_o]


# --------------------------------- wrapper --------------------------------

def _block_diag(a, b):
    top = jnp.concatenate([a, jnp.zeros((a.shape[0], b.shape[1]), a.dtype)], axis=1)
    bot = jnp.concatenate([jnp.zeros((b.shape[0], a.shape[1]), b.dtype), b], axis=1)
    return jnp.concatenate([top, bot], axis=0)


def _round_up(x, m):
    return ((x + m - 1) // m) * m


def contrastive_classifier(x1, x2, fe1_params, fe2_params, cls_params,
                           n_layers_feature, n_layers_cls, dim_output_cls,
                           *, block_batch=1024, use_bf16_matmul=False,
                           out_dtype=jnp.float32, fuse_siamese=None,
                           mxu_tile=128, core_parallel=False):
    assert block_batch % 8 == 0, "block_batch must be a multiple of 8"
    batch, d_in = x1.shape

    (g_in1, b_in1, w_in1, bb_in1, g_h1, b_h1, w_f1, b_f1, w_o1, b_o1) = fe1_params
    (g_in2, b_in2, w_in2, bb_in2, g_h2, b_h2, w_f2, b_f2, w_o2, b_o2) = fe2_params
    (w_in_c, b_in_c, g_c, bt_c, w_h_c, b_h_c, w_o_c, b_o_c) = cls_params

    d_h = w_in1.shape[1]
    d_out = w_o1.shape[1]
    out_pad = _round_up(dim_output_cls, 128)          # lane-dense output store

    # Fuse the two Siamese tails into block-diagonal matmuls only while both fused
    # dims fit a single MXU pass (128 = conservative v5e tile; pass mxu_tile=256
    # on v6e/v7x to fuse up to 128-wide branches).
    if fuse_siamese is None:
        fuse_siamese = (2 * d_h <= mxu_tile) and (2 * d_out <= mxu_tile)

    # ---- matmul weights (3 feature-extractor + 3 classifier operands) ----
    w_in_s = jnp.stack([w_in1, w_in2])                       # (2, d_in, d_h)
    if fuse_siamese:
        w_fcn = _block_diag(w_f1, w_f2)                      # (2*d_h, 2*d_h)
        w_out = _block_diag(w_o1, w_o2)                      # (2*d_h, 2*d_out)
    else:
        w_fcn = jnp.stack([w_f1, w_f2])                      # (2, d_h, d_h)
        w_out = jnp.stack([w_o1, w_o2])                      # (2, d_h, d_out)
    w_o_p = jnp.pad(w_o_c, ((0, 0), (0, out_pad - dim_output_cls)))
    weights = [w_in_s, w_fcn, w_out, w_in_c, w_h_c, w_o_p]
    if use_bf16_matmul:
        # Pre-cast once (HBM + VMEM footprint halved); kernel only casts activations.
        weights = [w.astype(jnp.bfloat16) for w in weights]

    # ---- pack all (1, N) gamma/beta/bias vectors into ONE operand ----
    b_o_pp = jnp.pad(b_o_c, ((0, 0), (0, out_pad - dim_output_cls)))
    vec_list = [g_in1, b_in1, bb_in1, g_h1, b_h1,
                g_in2, b_in2, bb_in2, g_h2, b_h2]
    if fuse_siamese:
        vec_list += [jnp.concatenate([b_f1, b_f2], axis=-1),
                     jnp.concatenate([b_o1, b_o2], axis=-1)]
    else:
        vec_list += [b_f1, b_f2, b_o1, b_o2]
    vec_list += [b_in_c, g_c, bt_c, b_h_c, b_o_pp]
    w_pad = _round_up(max(v.shape[-1] for v in vec_list), 128)
    widths = tuple(int(v.shape[-1]) for v in vec_list)
    vecs = jnp.concatenate(
        [jnp.pad(v.astype(jnp.float32), ((0, 0), (0, w_pad - v.shape[-1])))
         for v in vec_list], axis=0)                         # (n_vec, w_pad)

    # ---- batch tile / grid (tb multiple of 8, or the full batch) ----
    tb = min(block_batch, batch)
    steps = pl.cdiv(batch, tb)
    grid = (steps,)

    # ---- explicit VMEM budget so scaled configs never exceed v7x's 64 MiB ----
    out_isz = np.dtype(out_dtype).itemsize
    resident = 2 * (sum(int(w.size) * w.dtype.itemsize for w in weights)
                    + int(vecs.size) * 4)
    io_tiles = 2 * (2 * tb * d_in * x1.dtype.itemsize) + 2 * tb * out_pad * out_isz
    live = 8 * tb * max(d_in, 2 * d_h, 2 * d_out, w_h_c.shape[1], out_pad) * 4
    vmem_limit = min(max(int(1.5 * (resident + io_tiles + live)), 32 * 1024 * 1024),
                     48 * 1024 * 1024)

    # A real v7x 2-TensorCore split needs CORE_PARALLEL and >= 2 grid steps;
    # plain parallel/arbitrary measure identically on 1-TC chips (v5e/v6e).
    if core_parallel and steps >= 2:
        dim_sem = (pltpu.CORE_PARALLEL,)
    else:
        dim_sem = (pltpu.PARALLEL,)

    kernel = functools.partial(_contrastive_kernel, n_layers_feature,
                               n_layers_cls, fuse_siamese, use_bf16_matmul,
                               widths)

    def _resident_spec(arr):
        zeros = (0,) * arr.ndim
        return pl.BlockSpec(arr.shape, lambda i, _z=zeros: _z)   # VMEM-resident

    x_spec = pl.BlockSpec((tb, d_in), lambda i: (i, 0))
    in_specs = ([x_spec, x_spec, _resident_spec(vecs)]
                + [_resident_spec(w) for w in weights])
    out_spec = pl.BlockSpec((tb, out_pad), lambda i: (i, 0))

    out = pl.pallas_call(
        kernel,
        out_shape=jax.ShapeDtypeStruct((batch, out_pad), out_dtype),
        grid=grid,
        in_specs=in_specs,
        out_specs=out_spec,
        compiler_params=pltpu.CompilerParams(
            dimension_semantics=dim_sem,
            vmem_limit_bytes=vmem_limit),
    )(x1, x2, vecs, *weights)

    return out[:, :dim_output_cls]


# -------------------------- pure-JAX reference -----------------------------

def _ln_ref(x, g, b, eps=1e-5):
    mu = jnp.mean(x, axis=-1, keepdims=True)
    var = jnp.mean((x - mu) * (x - mu), axis=-1, keepdims=True)
    return (x - mu) * jax.lax.rsqrt(var + eps) * g + b


def _fe_ref(x, p, n_layers):
    (g_in, b_in, w_in, bb_in, g_h, b_h, w_fcn, b_fcn, w_out, b_out) = p
    x = _ln_ref(x, g_in, b_in)
    x = x @ w_in + bb_in
    x = jnp.maximum(_ln_ref(x, g_h, b_h), 0.0)
    for _ in range(n_layers):
        x = jnp.maximum(x @ w_fcn + b_fcn, 0.0)
    return jnp.maximum(x @ w_out + b_out, 0.0)


def _reference(x1, x2, fe1_params, fe2_params, cls_params,
               n_layers_feature, n_layers_cls):
    e1 = _fe_ref(x1, fe1_params, n_layers_feature)
    e2 = _fe_ref(x2, fe2_params, n_layers_feature)
    (w_in_c, b_in_c, g_c, bt_c, w_h_c, b_h_c, w_o_c, b_o_c) = cls_params
    x = jnp.concatenate((e1, e2), axis=-1)
    x = jnp.maximum(_ln_ref(x @ w_in_c + b_in_c, g_c, bt_c), 0.0)
    for _ in range(n_layers_cls):
        x = jnp.maximum(x @ w_h_c + b_h_c, 0.0)
    return jax.nn.sigmoid(x @ w_o_c + b_o_c)


# ----------------------------------- main ----------------------------------

if __name__ == "__main__":
    # Small, MLP-consistent shapes.
    batch = 8
    n_layers_feature = 2
    dim_input_feature = 16
    dim_hidden_feature = 32
    dim_output_feature = 16
    n_layers_cls = 2
    dim_hidden_cls = 32
    dim_output_cls = 1

    key = jax.random.PRNGKey(0)
    k_x1, k_x2, k_fe1, k_fe2, k_cls, k_b1, k_b2 = jax.random.split(key, 7)

    x1 = jax.random.normal(k_x1, (batch, dim_input_feature), jnp.float32)
    x2 = jax.random.normal(k_x2, (batch, dim_input_feature), jnp.float32)

    fe1_params = make_feature_extractor_params(
        k_fe1, dim_input_feature, dim_hidden_feature, dim_output_feature)
    fe2_params = make_feature_extractor_params(
        k_fe2, dim_input_feature, dim_hidden_feature, dim_output_feature)
    cls_params = make_classifier_params(
        k_cls, dim_output_feature, dim_hidden_cls, dim_output_cls)

    ref = _reference(x1, x2, fe1_params, fe2_params, cls_params,
                     n_layers_feature, n_layers_cls)

    # Fused-tail path (2*width fits one MXU pass).
    out = contrastive_classifier(x1, x2, fe1_params, fe2_params, cls_params,
                                 n_layers_feature, n_layers_cls, dim_output_cls)
    out = jax.block_until_ready(out)
    assert out.shape == (batch, dim_output_cls)
    assert jnp.allclose(out, ref, atol=1e-4, rtol=1e-4)

    # Unfused per-branch tail path (taken automatically once 2*width exceeds
    # one MXU tile); forced here so both code paths are validated.
    out_uf = contrastive_classifier(x1, x2, fe1_params, fe2_params, cls_params,
                                    n_layers_feature, n_layers_cls, dim_output_cls,
                                    fuse_siamese=False)
    out_uf = jax.block_until_ready(out_uf)
    assert jnp.allclose(out_uf, ref, atol=1e-4, rtol=1e-4)

    # Multi-step grid with a ragged last batch tile (out-of-bounds rows are
    # computed on padding but their writes are discarded).
    xb1 = jax.random.normal(k_b1, (20, dim_input_feature), jnp.float32)
    xb2 = jax.random.normal(k_b2, (20, dim_input_feature), jnp.float32)
    out_big = contrastive_classifier(xb1, xb2, fe1_params, fe2_params, cls_params,
                                     n_layers_feature, n_layers_cls, dim_output_cls,
                                     block_batch=8)
    out_big = jax.block_until_ready(out_big)
    ref_big = _reference(xb1, xb2, fe1_params, fe2_params, cls_params,
                         n_layers_feature, n_layers_cls)
    assert jnp.allclose(out_big, ref_big, atol=1e-4, rtol=1e-4)

    print("KERNEL_OK")
</pallas_src>

<mosaic_0001>
module attributes {stable_mosaic.version = 11 : i64} {
  func.func @_contrastive_kernel(%arg0: i32, %arg1: memref<8x16xf32, #tpu.memory_space<vmem>>, %arg2: memref<8x16xf32, #tpu.memory_space<vmem>>, %arg3: memref<17x128xf32, #tpu.memory_space<vmem>>, %arg4: memref<2x16x32xf32, #tpu.memory_space<vmem>>, %arg5: memref<64x64xf32, #tpu.memory_space<vmem>>, %arg6: memref<64x32xf32, #tpu.memory_space<vmem>>, %arg7: memref<32x32xf32, #tpu.memory_space<vmem>>, %arg8: memref<32x32xf32, #tpu.memory_space<vmem>>, %arg9: memref<32x128xf32, #tpu.memory_space<vmem>>, %arg10: memref<8x128xf32, #tpu.memory_space<vmem>>) attributes {dimension_semantics = [#tpu.dimension_semantics<parallel>], iteration_bounds = array<i64: 1>, scalar_prefetch = 0 : i64, scratch_operands = 0 : i64, tpu.core_type = #tpu.core_type<tc>, window_params = [{transform_indices = @transform_0, window_bounds = array<i64: 8, 16>}, {transform_indices = @transform_1, window_bounds = array<i64: 8, 16>}, {pipeline_mode = #tpu.pipeline_mode<synchronous>, transform_indices = @transform_2, window_bounds = array<i64: 17, 128>}, {pipeline_mode = #tpu.pipeline_mode<synchronous>, transform_indices = @transform_3, window_bounds = array<i64: 2, 16, 32>}, {pipeline_mode = #tpu.pipeline_mode<synchronous>, transform_indices = @transform_4, window_bounds = array<i64: 64, 64>}, {pipeline_mode = #tpu.pipeline_mode<synchronous>, transform_indices = @transform_5, window_bounds = array<i64: 64, 32>}, {pipeline_mode = #tpu.pipeline_mode<synchronous>, transform_indices = @transform_6, window_bounds = array<i64: 32, 32>}, {pipeline_mode = #tpu.pipeline_mode<synchronous>, transform_indices = @transform_7, window_bounds = array<i64: 32, 32>}, {pipeline_mode = #tpu.pipeline_mode<synchronous>, transform_indices = @transform_8, window_bounds = array<i64: 32, 128>}, {transform_indices = @transform_9, window_bounds = array<i64: 8, 128>}]} {
    %c0 = arith.constant 0 : index
    %c0_0 = arith.constant 0 : index
    %c0_1 = arith.constant 0 : index
    %0 = vector.load %arg4[%c0, %c0_0, %c0_1] : memref<2x16x32xf32, #tpu.memory_space<vmem>>, vector<1x16x32xf32>
    %1 = vector.shape_cast %0 : vector<1x16x32xf32> to vector<16x32xf32>
    %c0_2 = arith.constant 0 : index
    %c0_3 = arith.constant 0 : index
    %2 = vector.load %arg3[%c0_2, %c0_3] : memref<17x128xf32, #tpu.memory_space<vmem>>, vector<1x16xf32>
    %c1 = arith.constant 1 : index
    %c0_4 = arith.constant 0 : index
    %3 = vector.load %arg3[%c1, %c0_4] : memref<17x128xf32, #tpu.memory_space<vmem>>, vector<1x16xf32>
    %c2 = arith.constant 2 : index
    %c0_5 = arith.constant 0 : index
    %4 = vector.load %arg3[%c2, %c0_5] : memref<17x128xf32, #tpu.memory_space<vmem>>, vector<1x32xf32>
    %c3 = arith.constant 3 : index
    %c0_6 = arith.constant 0 : index
    %5 = vector.load %arg3[%c3, %c0_6] : memref<17x128xf32, #tpu.memory_space<vmem>>, vector<1x32xf32>
    %c4 = arith.constant 4 : index
    %c0_7 = arith.constant 0 : index
    %6 = vector.load %arg3[%c4, %c0_7] : memref<17x128xf32, #tpu.memory_space<vmem>>, vector<1x32xf32>
    %c0_8 = arith.constant 0 : index
    %c0_9 = arith.constant 0 : index
    %7 = vector.load %arg1[%c0_8, %c0_9] : memref<8x16xf32, #tpu.memory_space<vmem>>, vector<8x16xf32>
    %cst = arith.constant dense<0.000000e+00> : vector<8xf32>
    %8 = vector.multi_reduction <add>, %7, %cst [1] : vector<8x16xf32> to vector<8xf32>
    %9 = vector.shape_cast %8 : vector<8xf32> to vector<8x1xf32>
    %10 = arith.mulf %7, %7 : vector<8x16xf32>
    %cst_10 = arith.constant dense<0.000000e+00> : vector<8xf32>
    %11 = vector.multi_reduction <add>, %10, %cst_10 [1] : vector<8x16xf32> to vector<8xf32>
    %12 = vector.shape_cast %11 : vector<8xf32> to vector<8x1xf32>
    %cst_11 = arith.constant 6.250000e-02 : f32
    %13 = vector.broadcast %cst_11 : f32 to vector<8x1xf32>
    %14 = arith.mulf %9, %13 : vector<8x1xf32>
    %cst_12 = arith.constant 6.250000e-02 : f32
    %15 = vector.broadcast %cst_12 : f32 to vector<8x1xf32>
    %16 = arith.mulf %12, %15 : vector<8x1xf32>
    %17 = arith.mulf %14, %14 : vector<8x1xf32>
    %18 = arith.subf %16, %17 : vector<8x1xf32>
    %cst_13 = arith.constant 0.000000e+00 : f32
    %19 = vector.broadcast %cst_13 : f32 to vector<8x1xf32>
    %20 = arith.maximumf %18, %19 : vector<8x1xf32>
    %21 = vector.broadcast %14 : vector<8x1xf32> to vector<8x16xf32>
    %22 = arith.subf %7, %21 : vector<8x16xf32>
    %cst_14 = arith.constant 9.99999974E-6 : f32
    %23 = vector.broadcast %cst_14 : f32 to vector<8x1xf32>
    %24 = arith.addf %20, %23 : vector<8x1xf32>
    %25 = math.rsqrt %24 : vector<8x1xf32>
    %26 = vector.broadcast %25 : vector<8x1xf32> to vector<8x16xf32>
    %27 = arith.mulf %22, %26 : vector<8x16xf32>
    %28 = vector.broadcast %2 : vector<1x16xf32> to vector<8x16xf32>
    %29 = arith.mulf %27, %28 : vector<8x16xf32>
    %30 = vector.broadcast %3 : vector<1x16xf32> to vector<8x16xf32>
    %31 = arith.addf %29, %30 : vector<8x16xf32>
    %cst_15 = arith.constant dense<0.000000e+00> : vector<8x32xf32>
    %32 = tpu.matmul %31, %1, %cst_15 {dimension_numbers = #tpu.dot_dimension_numbers<[1], [0], [0], [1], [0, 0, 1, 1], [], []>} : vector<8x16xf32>, vector<16x32xf32>, vector<8x32xf32> -> vector<8x32xf32>
    %33 = vector.broadcast %4 : vector<1x32xf32> to vector<8x32xf32>
    %34 = arith.addf %32, %33 : vector<8x32xf32>
    %cst_16 = arith.constant dense<0.000000e+00> : vector<8xf32>
    %35 = vector.multi_reduction <add>, %34, %cst_16 [1] : vector<8x32xf32> to vector<8xf32>
    %36 = vector.shape_cast %35 : vector<8xf32> to vector<8x1xf32>
    %37 = arith.mulf %34, %34 : vector<8x32xf32>
    %cst_17 = arith.constant dense<0.000000e+00> : vector<8xf32>
    %38 = vector.multi_reduction <add>, %37, %cst_17 [1] : vector<8x32xf32> to vector<8xf32>
    %39 = vector.shape_cast %38 : vector<8xf32> to vector<8x1xf32>
    %cst_18 = arith.constant 3.125000e-02 : f32
    %40 = vector.broadcast %cst_18 : f32 to vector<8x1xf32>
    %41 = arith.mulf %36, %40 : vector<8x1xf32>
    %cst_19 = arith.constant 3.125000e-02 : f32
    %42 = vector.broadcast %cst_19 : f32 to vector<8x1xf32>
    %43 = arith.mulf %39, %42 : vector<8x1xf32>
    %44 = arith.mulf %41, %41 : vector<8x1xf32>
    %45 = arith.subf %43, %44 : vector<8x1xf32>
    %cst_20 = arith.constant 0.000000e+00 : f32
    %46 = vector.broadcast %cst_20 : f32 to vector<8x1xf32>
    %47 = arith.maximumf %45, %46 : vector<8x1xf32>
    %48 = vector.broadcast %41 : vector<8x1xf32> to vector<8x32xf32>
    %49 = arith.subf %34, %48 : vector<8x32xf32>
    %cst_21 = arith.constant 9.99999974E-6 : f32
    %50 = vector.broadcast %cst_21 : f32 to vector<8x1xf32>
    %51 = arith.addf %47, %50 : vector<8x1xf32>
    %52 = math.rsqrt %51 : vector<8x1xf32>
    %53 = vector.broadcast %52 : vector<8x1xf32> to vector<8x32xf32>
    %54 = arith.mulf %49, %53 : vector<8x32xf32>
    %55 = vector.broadcast %5 : vector<1x32xf32> to vector<8x32xf32>
    %56 = arith.mulf %54, %55 : vector<8x32xf32>
    %57 = vector.broadcast %6 : vector<1x32xf32> to vector<8x32xf32>
    %58 = arith.addf %56, %57 : vector<8x32xf32>
    %cst_22 = arith.constant 0.000000e+00 : f32
    %59 = vector.broadcast %cst_22 : f32 to vector<8x32xf32>
    %60 = arith.maximumf %58, %59 : vector<8x32xf32>
    %c1_23 = arith.constant 1 : index
    %c0_24 = arith.constant 0 : index
    %c0_25 = arith.constant 0 : index
    %61 = vector.load %arg4[%c1_23, %c0_24, %c0_25] : memref<2x16x32xf32, #tpu.memory_space<vmem>>, vector<1x16x32xf32>
    %62 = vector.shape_cast %61 : vector<1x16x32xf32> to vector<16x32xf32>
    %c5 = arith.constant 5 : index
    %c0_26 = arith.constant 0 : index
    %63 = vector.load %arg3[%c5, %c0_26] : memref<17x128xf32, #tpu.memory_space<vmem>>, vector<1x16xf32>
    %c6 = arith.constant 6 : index
    %c0_27 = arith.constant 0 : index
    %64 = vector.load %arg3[%c6, %c0_27] : memref<17x128xf32, #tpu.memory_space<vmem>>, vector<1x16xf32>
    %c7 = arith.constant 7 : index
    %c0_28 = arith.constant 0 : index
    %65 = vector.load %arg3[%c7, %c0_28] : memref<17x128xf32, #tpu.memory_space<vmem>>, vector<1x32xf32>
    %c8 = arith.constant 8 : index
    %c0_29 = arith.constant 0 : index
    %66 = vector.load %arg3[%c8, %c0_29] : memref<17x128xf32, #tpu.memory_space<vmem>>, vector<1x32xf32>
    %c9 = arith.constant 9 : index
    %c0_30 = arith.constant 0 : index
    %67 = vector.load %arg3[%c9, %c0_30] : memref<17x128xf32, #tpu.memory_space<vmem>>, vector<1x32xf32>
    %c0_31 = arith.constant 0 : index
    %c0_32 = arith.constant 0 : index
    %68 = vector.load %arg2[%c0_31, %c0_32] : memref<8x16xf32, #tpu.memory_space<vmem>>, vector<8x16xf32>
    %cst_33 = arith.constant dense<0.000000e+00> : vector<8xf32>
    %69 = vector.multi_reduction <add>, %68, %cst_33 [1] : vector<8x16xf32> to vector<8xf32>
    %70 = vector.shape_cast %69 : vector<8xf32> to vector<8x1xf32>
    %71 = arith.mulf %68, %68 : vector<8x16xf32>
    %cst_34 = arith.constant dense<0.000000e+00> : vector<8xf32>
    %72 = vector.multi_reduction <add>, %71, %cst_34 [1] : vector<8x16xf32> to vector<8xf32>
    %73 = vector.shape_cast %72 : vector<8xf32> to vector<8x1xf32>
    %cst_35 = arith.constant 6.250000e-02 : f32
    %74 = vector.broadcast %cst_35 : f32 to vector<8x1xf32>
    %75 = arith.mulf %70, %74 : vector<8x1xf32>
    %cst_36 = arith.constant 6.250000e-02 : f32
    %76 = vector.broadcast %cst_36 : f32 to vector<8x1xf32>
    %77 = arith.mulf %73, %76 : vector<8x1xf32>
    %78 = arith.mulf %75, %75 : vector<8x1xf32>
    %79 = arith.subf %77, %78 : vector<8x1xf32>
    %cst_37 = arith.constant 0.000000e+00 : f32
    %80 = vector.broadcast %cst_37 : f32 to vector<8x1xf32>
    %81 = arith.maximumf %79, %80 : vector<8x1xf32>
    %82 = vector.broadcast %75 : vector<8x1xf32> to vector<8x16xf32>
    %83 = arith.subf %68, %82 : vector<8x16xf32>
    %cst_38 = arith.constant 9.99999974E-6 : f32
    %84 = vector.broadcast %cst_38 : f32 to vector<8x1xf32>
    %85 = arith.addf %81, %84 : vector<8x1xf32>
    %86 = math.rsqrt %85 : vector<8x1xf32>
    %87 = vector.broadcast %86 : vector<8x1xf32> to vector<8x16xf32>
    %88 = arith.mulf %83, %87 : vector<8x16xf32>
    %89 = vector.broadcast %63 : vector<1x16xf32> to vector<8x16xf32>
    %90 = arith.mulf %88, %89 : vector<8x16xf32>
    %91 = vector.broadcast %64 : vector<1x16xf32> to vector<8x16xf32>
    %92 = arith.addf %90, %91 : vector<8x16xf32>
    %cst_39 = arith.constant dense<0.000000e+00> : vector<8x32xf32>
    %93 = tpu.matmul %92, %62, %cst_39 {dimension_numbers = #tpu.dot_dimension_numbers<[1], [0], [0], [1], [0, 0, 1, 1], [], []>} : vector<8x16xf32>, vector<16x32xf32>, vector<8x32xf32> -> vector<8x32xf32>
    %94 = vector.broadcast %65 : vector<1x32xf32> to vector<8x32xf32>
    %95 = arith.addf %93, %94 : vector<8x32xf32>
    %cst_40 = arith.constant dense<0.000000e+00> : vector<8xf32>
    %96 = vector.multi_reduction <add>, %95, %cst_40 [1] : vector<8x32xf32> to vector<8xf32>
    %97 = vector.shape_cast %96 : vector<8xf32> to vector<8x1xf32>
    %98 = arith.mulf %95, %95 : vector<8x32xf32>
    %cst_41 = arith.constant dense<0.000000e+00> : vector<8xf32>
    %99 = vector.multi_reduction <add>, %98, %cst_41 [1] : vector<8x32xf32> to vector<8xf32>
    %100 = vector.shape_cast %99 : vector<8xf32> to vector<8x1xf32>
    %cst_42 = arith.constant 3.125000e-02 : f32
    %101 = vector.broadcast %cst_42 : f32 to vector<8x1xf32>
    %102 = arith.mulf %97, %101 : vector<8x1xf32>
    %cst_43 = arith.constant 3.125000e-02 : f32
    %103 = vector.broadcast %cst_43 : f32 to vector<8x1xf32>
    %104 = arith.mulf %100, %103 : vector<8x1xf32>
    %105 = arith.mulf %102, %102 : vector<8x1xf32>
    %106 = arith.subf %104, %105 : vector<8x1xf32>
    %cst_44 = arith.constant 0.000000e+00 : f32
    %107 = vector.broadcast %cst_44 : f32 to vector<8x1xf32>
    %108 = arith.maximumf %106, %107 : vector<8x1xf32>
    %109 = vector.broadcast %102 : vector<8x1xf32> to vector<8x32xf32>
    %110 = arith.subf %95, %109 : vector<8x32xf32>
    %cst_45 = arith.constant 9.99999974E-6 : f32
    %111 = vector.broadcast %cst_45 : f32 to vector<8x1xf32>
    %112 = arith.addf %108, %111 : vector<8x1xf32>
    %113 = math.rsqrt %112 : vector<8x1xf32>
    %114 = vector.broadcast %113 : vector<8x1xf32> to vector<8x32xf32>
    %115 = arith.mulf %110, %114 : vector<8x32xf32>
    %116 = vector.broadcast %66 : vector<1x32xf32> to vector<8x32xf32>
    %117 = arith.mulf %115, %116 : vector<8x32xf32>
    %118 = vector.broadcast %67 : vector<1x32xf32> to vector<8x32xf32>
    %119 = arith.addf %117, %118 : vector<8x32xf32>
    %cst_46 = arith.constant 0.000000e+00 : f32
    %120 = vector.broadcast %cst_46 : f32 to vector<8x32xf32>
    %121 = arith.maximumf %119, %120 : vector<8x32xf32>
    %c10 = arith.constant 10 : index
    %c0_47 = arith.constant 0 : index
    %122 = vector.load %arg3[%c10, %c0_47] : memref<17x128xf32, #tpu.memory_space<vmem>>, vector<1x64xf32>
    %c11 = arith.constant 11 : index
    %c0_48 = arith.constant 0 : index
    %123 = vector.load %arg3[%c11, %c0_48] : memref<17x128xf32, #tpu.memory_space<vmem>>, vector<1x32xf32>
    %124 = tpu.concatenate %60, %121 in 1 : vector<8x32xf32>, vector<8x32xf32> -> vector<8x64xf32>
    %125 = vector.shape_cast %122 : vector<1x64xf32> to vector<1x64xf32>
    %126 = vector.broadcast %125 : vector<1x64xf32> to vector<8x64xf32>
    %c0_49 = arith.constant 0 : index
    %c0_50 = arith.constant 0 : index
    %127 = vector.load %arg5[%c0_49, %c0_50] : memref<64x64xf32, #tpu.memory_space<vmem>>, vector<64x64xf32>
    %cst_51 = arith.constant dense<0.000000e+00> : vector<8x64xf32>
    %128 = tpu.matmul %124, %127, %cst_51 {dimension_numbers = #tpu.dot_dimension_numbers<[1], [0], [0], [1], [0, 0, 1, 1], [], []>} : vector<8x64xf32>, vector<64x64xf32>, vector<8x64xf32> -> vector<8x64xf32>
    %129 = arith.addf %128, %126 : vector<8x64xf32>
    %cst_52 = arith.constant 0.000000e+00 : f32
    %130 = vector.broadcast %cst_52 : f32 to vector<8x64xf32>
    %131 = arith.maximumf %129, %130 : vector<8x64xf32>
    %cst_53 = arith.constant dense<0.000000e+00> : vector<8x64xf32>
    %132 = tpu.matmul %131, %127, %cst_53 {dimension_numbers = #tpu.dot_dimension_numbers<[1], [0], [0], [1], [0, 0, 1, 1], [], []>} : vector<8x64xf32>, vector<64x64xf32>, vector<8x64xf32> -> vector<8x64xf32>
    %133 = arith.addf %132, %126 : vector<8x64xf32>
    %cst_54 = arith.constant 0.000000e+00 : f32
    %134 = vector.broadcast %cst_54 : f32 to vector<8x64xf32>
    %135 = arith.maximumf %133, %134 : vector<8x64xf32>
    %c0_55 = arith.constant 0 : index
    %c0_56 = arith.constant 0 : index
    %136 = vector.load %arg6[%c0_55, %c0_56] : memref<64x32xf32, #tpu.memory_space<vmem>>, vector<64x32xf32>
    %cst_57 = arith.constant dense<0.000000e+00> : vector<8x32xf32>
    %137 = tpu.matmul %135, %136, %cst_57 {dimension_numbers = #tpu.dot_dimension_numbers<[1], [0], [0], [1], [0, 0, 1, 1], [], []>} : vector<8x64xf32>, vector<64x32xf32>, vector<8x32xf32> -> vector<8x32xf32>
    %138 = vector.broadcast %123 : vector<1x32xf32> to vector<8x32xf32>
    %139 = arith.addf %137, %138 : vector<8x32xf32>
    %cst_58 = arith.constant 0.000000e+00 : f32
    %140 = vector.broadcast %cst_58 : f32 to vector<8x32xf32>
    %141 = arith.maximumf %139, %140 : vector<8x32xf32>
    %c12 = arith.constant 12 : index
    %c0_59 = arith.constant 0 : index
    %142 = vector.load %arg3[%c12, %c0_59] : memref<17x128xf32, #tpu.memory_space<vmem>>, vector<1x32xf32>
    %c13 = arith.constant 13 : index
    %c0_60 = arith.constant 0 : index
    %143 = vector.load %arg3[%c13, %c0_60] : memref<17x128xf32, #tpu.memory_space<vmem>>, vector<1x32xf32>
    %c14 = arith.constant 14 : index
    %c0_61 = arith.constant 0 : index
    %144 = vector.load %arg3[%c14, %c0_61] : memref<17x128xf32, #tpu.memory_space<vmem>>, vector<1x32xf32>
    %c15 = arith.constant 15 : index
    %c0_62 = arith.constant 0 : index
    %145 = vector.load %arg3[%c15, %c0_62] : memref<17x128xf32, #tpu.memory_space<vmem>>, vector<1x32xf32>
    %c16 = arith.constant 16 : index
    %c0_63 = arith.constant 0 : index
    %146 = vector.load %arg3[%c16, %c0_63] : memref<17x128xf32, #tpu.memory_space<vmem>>, vector<1x128xf32>
    %c0_64 = arith.constant 0 : index
    %c0_65 = arith.constant 0 : index
    %147 = vector.load %arg7[%c0_64, %c0_65] : memref<32x32xf32, #tpu.memory_space<vmem>>, vector<32x32xf32>
    %cst_66 = arith.constant dense<0.000000e+00> : vector<8x32xf32>
    %148 = tpu.matmul %141, %147, %cst_66 {dimension_numbers = #tpu.dot_dimension_numbers<[1], [0], [0], [1], [0, 0, 1, 1], [], []>} : vector<8x32xf32>, vector<32x32xf32>, vector<8x32xf32> -> vector<8x32xf32>
    %149 = vector.broadcast %142 : vector<1x32xf32> to vector<8x32xf32>
    %150 = arith.addf %148, %149 : vector<8x32xf32>
    %cst_67 = arith.constant dense<0.000000e+00> : vector<8xf32>
    %151 = vector.multi_reduction <add>, %150, %cst_67 [1] : vector<8x32xf32> to vector<8xf32>
    %152 = vector.shape_cast %151 : vector<8xf32> to vector<8x1xf32>
    %153 = arith.mulf %150, %150 : vector<8x32xf32>
    %cst_68 = arith.constant dense<0.000000e+00> : vector<8xf32>
    %154 = vector.multi_reduction <add>, %153, %cst_68 [1] : vector<8x32xf32> to vector<8xf32>
    %155 = vector.shape_cast %154 : vector<8xf32> to vector<8x1xf32>
    %cst_69 = arith.constant 3.125000e-02 : f32
    %156 = vector.broadcast %cst_69 : f32 to vector<8x1xf32>
    %157 = arith.mulf %152, %156 : vector<8x1xf32>
    %cst_70 = arith.constant 3.125000e-02 : f32
    %158 = vector.broadcast %cst_70 : f32 to vector<8x1xf32>
    %159 = arith.mulf %155, %158 : vector<8x1xf32>
    %160 = arith.mulf %157, %157 : vector<8x1xf32>
    %161 = arith.subf %159, %160 : vector<8x1xf32>
    %cst_71 = arith.constant 0.000000e+00 : f32
    %162 = vector.broadcast %cst_71 : f32 to vector<8x1xf32>
    %163 = arith.maximumf %161, %162 : vector<8x1xf32>
    %164 = vector.broadcast %157 : vector<8x1xf32> to vector<8x32xf32>
    %165 = arith.subf %150, %164 : vector<8x32xf32>
    %cst_72 = arith.constant 9.99999974E-6 : f32
    %166 = vector.broadcast %cst_72 : f32 to vector<8x1xf32>
    %167 = arith.addf %163, %166 : vector<8x1xf32>
    %168 = math.rsqrt %167 : vector<8x1xf32>
    %169 = vector.broadcast %168 : vector<8x1xf32> to vector<8x32xf32>
    %170 = arith.mulf %165, %169 : vector<8x32xf32>
    %171 = vector.broadcast %143 : vector<1x32xf32> to vector<8x32xf32>
    %172 = arith.mulf %170, %171 : vector<8x32xf32>
    %173 = vector.broadcast %144 : vector<1x32xf32> to vector<8x32xf32>
    %174 = arith.addf %172, %173 : vector<8x32xf32>
    %cst_73 = arith.constant 0.000000e+00 : f32
    %175 = vector.broadcast %cst_73 : f32 to vector<8x32xf32>
    %176 = arith.maximumf %174, %175 : vector<8x32xf32>
    %177 = vector.shape_cast %145 : vector<1x32xf32> to vector<1x32xf32>
    %178 = vector.broadcast %177 : vector<1x32xf32> to vector<8x32xf32>
    %c0_74 = arith.constant 0 : index
    %c0_75 = arith.constant 0 : index
    %179 = vector.load %arg8[%c0_74, %c0_75] : memref<32x32xf32, #tpu.memory_space<vmem>>, vector<32x32xf32>
    %cst_76 = arith.constant dense<0.000000e+00> : vector<8x32xf32>
    %180 = tpu.matmul %176, %179, %cst_76 {dimension_numbers = #tpu.dot_dimension_numbers<[1], [0], [0], [1], [0, 0, 1, 1], [], []>} : vector<8x32xf32>, vector<32x32xf32>, vector<8x32xf32> -> vector<8x32xf32>
    %181 = arith.addf %180, %178 : vector<8x32xf32>
    %cst_77 = arith.constant 0.000000e+00 : f32
    %182 = vector.broadcast %cst_77 : f32 to vector<8x32xf32>
    %183 = arith.maximumf %181, %182 : vector<8x32xf32>
    %cst_78 = arith.constant dense<0.000000e+00> : vector<8x32xf32>
    %184 = tpu.matmul %183, %179, %cst_78 {dimension_numbers = #tpu.dot_dimension_numbers<[1], [0], [0], [1], [0, 0, 1, 1], [], []>} : vector<8x32xf32>, vector<32x32xf32>, vector<8x32xf32> -> vector<8x32xf32>
    %185 = arith.addf %184, %178 : vector<8x32xf32>
    %cst_79 = arith.constant 0.000000e+00 : f32
    %186 = vector.broadcast %cst_79 : f32 to vector<8x32xf32>
    %187 = arith.maximumf %185, %186 : vector<8x32xf32>
    %c0_80 = arith.constant 0 : index
    %c0_81 = arith.constant 0 : index
    %188 = vector.load %arg9[%c0_80, %c0_81] : memref<32x128xf32, #tpu.memory_space<vmem>>, vector<32x128xf32>
    %cst_82 = arith.constant dense<0.000000e+00> : vector<8x128xf32>
    %189 = tpu.matmul %187, %188, %cst_82 {dimension_numbers = #tpu.dot_dimension_numbers<[1], [0], [0], [1], [0, 0, 1, 1], [], []>} : vector<8x32xf32>, vector<32x128xf32>, vector<8x128xf32> -> vector<8x128xf32>
    %190 = vector.broadcast %146 : vector<1x128xf32> to vector<8x128xf32>
    %191 = arith.addf %189, %190 : vector<8x128xf32>
    %192 = arith.negf %191 : vector<8x128xf32>
    %193 = math.exp %192 : vector<8x128xf32>
    %cst_83 = arith.constant 1.000000e+00 : f32
    %194 = vector.broadcast %cst_83 : f32 to vector<8x128xf32>
    %195 = arith.addf %194, %193 : vector<8x128xf32>
    %196 = arith.divf %194, %195 : vector<8x128xf32>
    %c0_84 = arith.constant 0 : index
    %c0_85 = arith.constant 0 : index
    %197 = vector.load %arg10[%c0_84, %c0_85] : memref<8x128xf32, #tpu.memory_space<vmem>>, vector<8x128xf32>
    tpu.vector_store %arg10[%c0_84, %c0_85], %196 {strides = array<i32>} : memref<8x128xf32, #tpu.memory_space<vmem>>, vector<8x128xf32>,
    return
  }
  func.func @transform_0(%arg0: i32) -> (i32, i32) {
    %c0_i32 = arith.constant 0 : i32
    %c0_i32_0 = arith.constant 0 : i32
    return %arg0, %c0_i32 : i32, i32
  }
  func.func @transform_1(%arg0: i32) -> (i32, i32) {
    %c0_i32 = arith.constant 0 : i32
    %c0_i32_0 = arith.constant 0 : i32
    return %arg0, %c0_i32 : i32, i32
  }
  func.func @transform_2(%arg0: i32) -> (i32, i32) {
    %c0_i32 = arith.constant 0 : i32
    %c0_i32_0 = arith.constant 0 : i32
    %c0_i32_1 = arith.constant 0 : i32
    return %c0_i32, %c0_i32_0 : i32, i32
  }
  func.func @transform_3(%arg0: i32) -> (i32, i32, i32) {
    %c0_i32 = arith.constant 0 : i32
    %c0_i32_0 = arith.constant 0 : i32
    %c0_i32_1 = arith.constant 0 : i32
    %c0_i32_2 = arith.constant 0 : i32
    return %c0_i32, %c0_i32_0, %c0_i32_1 : i32, i32, i32
  }
  func.func @transform_4(%arg0: i32) -> (i32, i32) {
    %c0_i32 = arith.constant 0 : i32
    %c0_i32_0 = arith.constant 0 : i32
    %c0_i32_1 = arith.constant 0 : i32
    return %c0_i32, %c0_i32_0 : i32, i32
  }
  func.func @transform_5(%arg0: i32) -> (i32, i32) {
    %c0_i32 = arith.constant 0 : i32
    %c0_i32_0 = arith.constant 0 : i32
    %c0_i32_1 = arith.constant 0 : i32
    return %c0_i32, %c0_i32_0 : i32, i32
  }
  func.func @transform_6(%arg0: i32) -> (i32, i32) {
    %c0_i32 = arith.constant 0 : i32
    %c0_i32_0 = arith.constant 0 : i32
    %c0_i32_1 = arith.constant 0 : i32
    return %c0_i32, %c0_i32_0 : i32, i32
  }
  func.func @transform_7(%arg0: i32) -> (i32, i32) {
    %c0_i32 = arith.constant 0 : i32
    %c0_i32_0 = arith.constant 0 : i32
    %c0_i32_1 = arith.constant 0 : i32
    return %c0_i32, %c0_i32_0 : i32, i32
  }
  func.func @transform_8(%arg0: i32) -> (i32, i32) {
    %c0_i32 = arith.constant 0 : i32
    %c0_i32_0 = arith.constant 0 : i32
    %c0_i32_1 = arith.constant 0 : i32
    return %c0_i32, %c0_i32_0 : i32, i32
  }
  func.func @transform_9(%arg0: i32) -> (i32, i32) {
    %c0_i32 = arith.constant 0 : i32
    %c0_i32_0 = arith.constant 0 : i32
    return %arg0, %c0_i32 : i32, i32
  }
}

</mosaic_0001>

<llo_original>
// kernel: tpu_custom_call.1
$region0: #{tpu_custom_call.1}
  #allocation0 [shape = 'u32[]', space=smem, size = 0x4, offset = 0x4, fixed_abs, tag = 'smem constant byte address 0x4 - core index']
  #allocation1 [shape = 'u32[144,128]{1,0:T(1,128)}', space=vmem, size = 0x12000, scoped, tag = 'internal scratch']
  %s0 = inlined_call_operand.vmem [shape: f32[8,16], index: 0, kind: input, shape index: {}]
  %s1 = inlined_call_operand.hbm [shape: f32[8,16], index: 1, kind: input, shape index: {}]
  %s2 = inlined_call_operand.hbm [shape: f32[17,128], index: 2, kind: input, shape index: {}]
  %s3 = inlined_call_operand.vmem [shape: f32[2,16,32], index: 3, kind: input, shape index: {}]
  %s4 = inlined_call_operand.vmem [shape: f32[64,64], index: 4, kind: input, shape index: {}]
  %s5 = inlined_call_operand.vmem [shape: f32[64,32], index: 5, kind: input, shape index: {}]
  %s6 = inlined_call_operand.hbm [shape: f32[32,32], index: 6, kind: input, shape index: {}]
  %s7 = inlined_call_operand.hbm [shape: f32[32,32], index: 7, kind: input, shape index: {}]
  %s8 = inlined_call_operand.hbm [shape: f32[32,128], index: 8, kind: input, shape index: {}]
  %s9 = inlined_call_operand.hbm [shape: f32[8,128], index: 9, kind: output, shape index: {}]
  %s10 = sld [smem:[#allocation0]]
  $region66: #{tpu_custom_call.1} parent=0
    _
  %s12 = ssub.s32 1, %s10
  %s13 = scalar_select 0, %s12, %s10
  $region1: #{tpu_custom_call.1} parent=0
    #allocation2 [shape = 'u8[4096]{0}', space=vmem, size = 0x1000, scoped, tag = 'input window, operand 1, single buffered']
    #allocation3 [shape = 's32[1]{0}', space=sflag, size = 0x4, scoped, tag = 'scoped memory for tpu_custom_call.1']
    #allocation4 [shape = 's32[1]{0}', space=sflag, size = 0x4, scoped, tag = 'scoped memory for tpu_custom_call.1']
    #allocation5 [shape = 'u8[12288]{0}', space=vmem, size = 0x3000, scoped, tag = 'input window, operand 2, single buffered']
    #allocation6 [shape = 's32[1]{0}', space=sflag, size = 0x4, scoped, tag = 'scoped memory for tpu_custom_call.1']
    #allocation7 [shape = 'u8[16384]{0}', space=vmem, size = 0x4000, scoped, tag = 'input window, operand 6, single buffered']
    #allocation8 [shape = 'u8[16384]{0}', space=vmem, size = 0x4000, scoped, tag = 'input window, operand 7, single buffered']
    #allocation9 [shape = 's32[1]{0}', space=sflag, size = 0x4, scoped, tag = 'scoped memory for tpu_custom_call.1']
    #allocation10 [shape = 'u8[16384]{0}', space=vmem, size = 0x4000, scoped, tag = 'input window, operand 8, single buffered']
    #allocation11 [shape = 'u8[4096]{0}', space=vmem, size = 0x1000, scoped, tag = 'output window, operand 0, single buffered']
    %14 = vsyncpa [#allocation3], 0
    %15 = vsyncpa [#allocation6], 0
    %16 = vsyncpa [#allocation9], 0
    %17 = vsyncpa [#allocation4], 0
    // Predicated region
    $region2: #{tpu_custom_call.1} parent=1 // pred_check
      _
    $region3: #{tpu_custom_call.1} parent=1 // pred_check_branch
      %19 = sbr.rel (0) target = $region5
    $region4: #{tpu_custom_call.1} parent=1 // pred_region
      _
    $region5: #{tpu_custom_call.1} parent=1 // pred_fallthru
      _
    // Predicated region
    $region6: #{tpu_custom_call.1} parent=1 // pred_check
      _
    $region7: #{tpu_custom_call.1} parent=1 // pred_check_branch
      %21 = sbr.rel (0) target = $region9
    $region8: #{tpu_custom_call.1} parent=1 // pred_region
      %s23 = ssub.s32 128, 128
      %24 = vsyncadd [#allocation3], %s23
      %s26 = sshll.u32 [#allocation2], 4
      %s27 = int_to_ptr.vmem [resolvable:$true] %s26
      %29 = dma.hbm_to_vmem [thread:$0]  %s1, 128, %s27, [#allocation3]
    $region9: #{tpu_custom_call.1} parent=1 // pred_fallthru
      _
    // Predicated region
    $region10: #{tpu_custom_call.1} parent=1 // pred_check
      _
    $region11: #{tpu_custom_call.1} parent=1 // pred_check_branch
      %31 = sbr.rel (0) target = $region13
    $region12: #{tpu_custom_call.1} parent=1 // pred_region
      %s33 = ssub.s32 384, 384
      %34 = vsyncadd [#allocation6], %s33
      %s35 = sshll.u32 [#allocation5], 4
      %s36 = int_to_ptr.vmem [resolvable:$true] %s35
      %41 = dma.hbm_to_vmem [thread:$0]  %s2, 384, %s36, [#allocation6], 128, 128, 8
    $region13: #{tpu_custom_call.1} parent=1 // pred_fallthru
      _
    // Predicated region
    $region14: #{tpu_custom_call.1} parent=1 // pred_check
      _
    $region15: #{tpu_custom_call.1} parent=1 // pred_check_branch
      %43 = sbr.rel (0) target = $region17
    $region16: #{tpu_custom_call.1} parent=1 // pred_region
      _
    $region17: #{tpu_custom_call.1} parent=1 // pred_fallthru
      _
    // Predicated region
    $region18: #{tpu_custom_call.1} parent=1 // pred_check
      _
    $region19: #{tpu_custom_call.1} parent=1 // pred_check_branch
      %45 = sbr.rel (0) target = $region21
    $region20: #{tpu_custom_call.1} parent=1 // pred_region
      _
    $region21: #{tpu_custom_call.1} parent=1 // pred_fallthru
      _
    // Predicated region
    $region22: #{tpu_custom_call.1} parent=1 // pred_check
      _
    $region23: #{tpu_custom_call.1} parent=1 // pred_check_branch
      %47 = sbr.rel (0) target = $region25
    $region24: #{tpu_custom_call.1} parent=1 // pred_region
      _
    $region25: #{tpu_custom_call.1} parent=1 // pred_fallthru
      _
    // Predicated region
    $region26: #{tpu_custom_call.1} parent=1 // pred_check
      _
    $region27: #{tpu_custom_call.1} parent=1 // pred_check_branch
      %49 = sbr.rel (0) target = $region29
    $region28: #{tpu_custom_call.1} parent=1 // pred_region
      %s51 = ssub.s32 512, 512
      %52 = vsyncadd [#allocation6], %s51
      %s53 = sshll.u32 [#allocation7], 4
      %s54 = int_to_ptr.vmem [resolvable:$true] %s53
      %59 = dma.hbm_to_vmem [thread:$0]  %s6, 512, %s54, [#allocation6], 128, 128, 8
    $region29: #{tpu_custom_call.1} parent=1 // pred_fallthru
      _
    // Predicated region
    $region30: #{tpu_custom_call.1} parent=1 // pred_check
      _
    $region31: #{tpu_custom_call.1} parent=1 // pred_check_branch
      %61 = sbr.rel (0) target = $region33
    $region32: #{tpu_custom_call.1} parent=1 // pred_region
      %s63 = ssub.s32 512, 512
      %64 = vsyncadd [#allocation9], %s63
      %s65 = sshll.u32 [#allocation8], 4
      %s66 = int_to_ptr.vmem [resolvable:$true] %s65
      %71 = dma.hbm_to_vmem [thread:$0]  %s7, 512, %s66, [#allocation9], 128, 128, 8
    $region33: #{tpu_custom_call.1} parent=1 // pred_fallthru
      _
    // Predicated region
    $region34: #{tpu_custom_call.1} parent=1 // pred_check
      _
    $region35: #{tpu_custom_call.1} parent=1 // pred_check_branch
      %73 = sbr.rel (0) target = $region37
    $region36: #{tpu_custom_call.1} parent=1 // pred_region
      %s75 = ssub.s32 512, 512
      %76 = vsyncadd [#allocation9], %s75
      %s77 = sshll.u32 [#allocation10], 4
      %s78 = int_to_ptr.vmem [resolvable:$true] %s77
      %83 = dma.hbm_to_vmem [thread:$0]  %s8, 512, %s78, [#allocation9], 128, 128, 8
    $region37: #{tpu_custom_call.1} parent=1 // pred_fallthru
      _
    // Predicated region
    $region38: #{tpu_custom_call.1} parent=1 // pred_check
      _
    $region39: #{tpu_custom_call.1} parent=1 // pred_check_branch
      %85 = sbr.rel (0) target = $region41
    $region40: #{tpu_custom_call.1} parent=1 // pred_region
      %86 = dma.done [#allocation3], 128
    $region41: #{tpu_custom_call.1} parent=1 // pred_fallthru
      _
    // Predicated region
    $region42: #{tpu_custom_call.1} parent=1 // pred_check
      _
    $region43: #{tpu_custom_call.1} parent=1 // pred_check_branch
      %88 = sbr.rel (0) target = $region45
    $region44: #{tpu_custom_call.1} parent=1 // pred_region
      %89 = dma.done [#allocation6], 384
    $region45: #{tpu_custom_call.1} parent=1 // pred_fallthru
      _
    // Predicated region
    $region46: #{tpu_custom_call.1} parent=1 // pred_check
      _
    $region47: #{tpu_custom_call.1} parent=1 // pred_check_branch
      %91 = sbr.rel (0) target = $region49
    $region48: #{tpu_custom_call.1} parent=1 // pred_region
      %92 = dma.done [#allocation6], 512
    $region49: #{tpu_custom_call.1} parent=1 // pred_fallthru
      _
    // Predicated region
    $region50: #{tpu_custom_call.1} parent=1 // pred_check
      _
    $region51: #{tpu_custom_call.1} parent=1 // pred_check_branch
      %94 = sbr.rel (0) target = $region53
    $region52: #{tpu_custom_call.1} parent=1 // pred_region
      %95 = dma.done [#allocation9], 512
    $region53: #{tpu_custom_call.1} parent=1 // pred_fallthru
      _
    // Predicated region
    $region54: #{tpu_custom_call.1} parent=1 // pred_check
      _
    $region55: #{tpu_custom_call.1} parent=1 // pred_check_branch
      %97 = sbr.rel (0) target = $region57
    $region56: #{tpu_custom_call.1} parent=1 // pred_region
      %98 = dma.done [#allocation9], 512
    $region57: #{tpu_custom_call.1} parent=1 // pred_fallthru
      _
    %v99 = vld [vmem:[%s3] sm:$0xff]
    %v100 = vld [vmem:[%s3 + $0x8] sm:$0xff]
    %v101 = vld [vmem:[#allocation5] sm:$0x1]
    %v102 = vld [vmem:[#allocation5 + $0x1] sm:$0x1]
    %v103 = vld [vmem:[#allocation5 + $0x2] sm:$0x1]
    %v104 = vld [vmem:[#allocation5 + $0x3] sm:$0x1]
    %v105 = vld [vmem:[#allocation5 + $0x4] sm:$0x1]
    %v106 = vld [vmem:[%s0] sm:$0xff]
    %vm107 = vcmask 130048
    %v108 = vsel %vm107, %v106, 0.0
    %109 = vadd.xlane.f32.xlu0 %v108
    %v110 = vpop.xlane.xlu0 %109
    %v111 = vmul.f32 %v106, %v106
    %v112 = vsel %vm107, %v111, 0.0
    %113 = vadd.xlane.f32.xlu0 %v112
    %v114 = vpop.xlane.xlu0 %113
    %v115 = vmul.f32 %v110, 0.0625
    %v116 = vmul.f32 %v114, 0.0625
    %v117 = vmul.f32 %v115, %v115
    %v118 = vsub.f32 %v116, %v117
    %v119 = vmax.f32 %v118, 0.0
    %v120 = vsub.f32 %v106, %v115
    %v121 = vadd.f32 %v119, 1e-05
    %v122 = vrsqrt.pop %v121
    %v123 = vmul.f32 %v120, %v122
    %v124 = vlaneseq
    %v125 = vshrl.u32 %v124, 7
    %v126 = vsub.s32 0, %v125
    %v127 = vrot.slane %v101, %v126
    %v128 = vmul.f32 %v123, %v127
    %v129 = vlaneseq
    %v130 = vshrl.u32 %v129, 7
    %v131 = vsub.s32 0, %v130
    %v132 = vrot.slane %v102, %v131
    %v133 = vadd.f32 %v128, %v132
    %v134 = vlaneseq
    %v135 = vshrl.u32 %v134, 7
    %v136 = vsub.s32 0, %v135
    %v137 = vrot.slane %v103, %v136
    %v139 = vsel %vm107, %v133, 0
    %141 = vmatprep.subr.mxu0 0.0
    %142 = vmatpush1.msra.mxu0 %v99
    %143 = vmatprep.subr.mxu0 0.0
    %144 = vmatpush1.msra.mxu0 %v100
    %145 = vmatprep.subr.mxu0 0.0
    %146 = vmatpush1.msra.mxu0 0.0
    %147 = vmatprep.subr.mxu0 0.0
    %148 = vmatpush1.msra.mxu0 0.0
    %149 = vmatprep.subr.mxu0 0.0
    %150 = vmatpush1.msra.mxu0 0.0
    %151 = vmatprep.subr.mxu0 0.0
    %152 = vmatpush1.msra.mxu0 0.0
    %153 = vmatprep.subr.mxu0 0.0
    %154 = vmatpush1.msra.mxu0 0.0
    %155 = vmatprep.subr.mxu0 0.0
    %156 = vmatpush1.msra.mxu0 0.0
    %157 = vmatprep.subr.mxu0 0.0
    %158 = vmatpush1.msra.mxu0 0.0
    %159 = vmatprep.subr.mxu0 0.0
    %160 = vmatpush1.msra.mxu0 0.0
    %161 = vmatprep.subr.mxu0 0.0
    %162 = vmatpush1.msra.mxu0 0.0
    %163 = vmatprep.subr.mxu0 0.0
    %164 = vmatpush1.msra.mxu0 0.0
    %165 = vmatprep.subr.mxu0 0.0
    %166 = vmatpush1.msra.mxu0 0.0
    %167 = vmatprep.subr.mxu0 0.0
    %168 = vmatpush1.msra.mxu0 0.0
    %169 = vmatprep.subr.mxu0 0.0
    %170 = vmatpush1.msra.mxu0 0.0
    %171 = vmatprep.subr.mxu0 0.0
    %172 = vmatpush1.msra.mxu0 0.0
    %173 = vmatprep.subr.mxu0 0.0
    %174 = vmatpush1.msra.mxu0 0.0
    %175 = vmatprep.subr.mxu0 0.0
    %176 = vmatpush1.msra.mxu0 0.0
    %177 = vmatprep.subr.mxu0 0.0
    %178 = vmatpush1.msra.mxu0 0.0
    %179 = vmatprep.subr.mxu0 0.0
    %180 = vmatpush1.msra.mxu0 0.0
    %181 = vmatprep.subr.mxu0 0.0
    %182 = vmatpush1.msra.mxu0 0.0
    %183 = vmatprep.subr.mxu0 0.0
    %184 = vmatpush1.msra.mxu0 0.0
    %185 = vmatprep.subr.mxu0 0.0
    %186 = vmatpush1.msra.mxu0 0.0
    %187 = vmatprep.subr.mxu0 0.0
    %188 = vmatpush1.msra.mxu0 0.0
    %189 = vmatprep.subr.mxu0 0.0
    %190 = vmatpush1.msra.mxu0 0.0
    %191 = vmatprep.subr.mxu0 0.0
    %192 = vmatpush1.msra.mxu0 0.0
    %193 = vmatprep.subr.mxu0 0.0
    %194 = vmatpush1.msra.mxu0 0.0
    %195 = vmatprep.subr.mxu0 0.0
    %196 = vmatpush1.msra.mxu0 0.0
    %197 = vmatprep.subr.mxu0 0.0
    %198 = vmatpush1.msra.mxu0 0.0
    %199 = vmatprep.subr.mxu0 0.0
    %200 = vmatpush1.msra.mxu0 0.0
    %201 = vmatprep.subr.mxu0 0.0
    %202 = vmatpush1.msra.mxu0 0.0
    %203 = vmatprep.subr.mxu0 0.0
    %204 = vmatpush1.msra.mxu0 0.0
    %205 = vmatprep.mubr.f32.mxu0 0.0
    %206 = vmatmul.mubr.f32.gmra.mrb[0].mxu0 %v139
    %v207 = vpop.f32.mrb[0].mxu0
    %v208 = vadd.f32 %v137, %v207
    %v209 = vpop.f32.mrb[0].mxu0
    %210 = vdwg.mxu0
    %vm211 = vcmask 261120
    %v212 = vsel %vm211, %v208, 0.0
    %213 = vadd.xlane.f32.xlu0 %v212
    %v214 = vpop.xlane.xlu0 %213
    %v215 = vmul.f32 %v208, %v208
    %v216 = vsel %vm211, %v215, 0.0
    %217 = vadd.xlane.f32.xlu0 %v216
    %v218 = vpop.xlane.xlu0 %217
    %v219 = vmul.f32 %v214, 0.03125
    %v220 = vmul.f32 %v218, 0.03125
    %v221 = vmul.f32 %v219, %v219
    %v222 = vsub.f32 %v220, %v221
    %v223 = vmax.f32 %v222, 0.0
    %v224 = vsub.f32 %v208, %v219
    %v225 = vadd.f32 %v223, 1e-05
    %v226 = vrsqrt.pop %v225
    %v227 = vmul.f32 %v224, %v226
    %v228 = vlaneseq
    %v229 = vshrl.u32 %v228, 7
    %v230 = vsub.s32 0, %v229
    %v231 = vrot.slane %v104, %v230
    %v232 = vmul.f32 %v227, %v231
    %v233 = vlaneseq
    %v234 = vshrl.u32 %v233, 7
    %v235 = vsub.s32 0, %v234
    %v236 = vrot.slane %v105, %v235
    %v237 = vadd.f32 %v232, %v236
    %v238 = vmax.f32 %v237, 0.0
    %s239 = scalar_lea.vmem %s3, 16
    %v240 = vld [vmem:[%s239] sm:$0xff]
    %v241 = vld [vmem:[%s239 + $0x8] sm:$0xff]
    %v242 = vld [vmem:[#allocation5 + $0x5] sm:$0x1]
    %v243 = vld [vmem:[#allocation5 + $0x6] sm:$0x1]
    %v244 = vld [vmem:[#allocation5 + $0x7] sm:$0x1]
    %v245 = vld [vmem:[#allocation5 + $0x8] sm:$0x1]
    %v246 = vld [vmem:[#allocation5 + $0x9] sm:$0x1]
    %v247 = vld [vmem:[#allocation2] sm:$0xff]
    %v248 = vsel %vm107, %v247, 0.0
    %249 = vadd.xlane.f32.xlu0 %v248
    %v250 = vpop.xlane.xlu0 %249
    %v251 = vmul.f32 %v247, %v247
    %v252 = vsel %vm107, %v251, 0.0
    %253 = vadd.xlane.f32.xlu0 %v252
    %v254 = vpop.xlane.xlu0 %253
    %v255 = vmul.f32 %v250, 0.0625
    %v256 = vmul.f32 %v254, 0.0625
    %v257 = vmul.f32 %v255, %v255
    %v258 = vsub.f32 %v256, %v257
    %v259 = vmax.f32 %v258, 0.0
    %v260 = vsub.f32 %v247, %v255
    %v261 = vadd.f32 %v259, 1e-05
    %v262 = vrsqrt.pop %v261
    %v263 = vmul.f32 %v260, %v262
    %v264 = vlaneseq
    %v265 = vshrl.u32 %v264, 7
    %v266 = vsub.s32 0, %v265
    %v267 = vrot.slane %v242, %v266
    %v268 = vmul.f32 %v263, %v267
    %v269 = vlaneseq
    %v270 = vshrl.u32 %v269, 7
    %v271 = vsub.s32 0, %v270
    %v272 = vrot.slane %v243, %v271
    %v273 = vadd.f32 %v268, %v272
    %v274 = vlaneseq
    %v275 = vshrl.u32 %v274, 7
    %v276 = vsub.s32 0, %v275
    %v277 = vrot.slane %v244, %v276
    %v279 = vsel %vm107, %v273, 0
    %281 = vmatprep.subr.mxu0 0.0
    %282 = vmatpush1.msra.mxu0 %v240
    %283 = vmatprep.subr.mxu0 0.0
    %284 = vmatpush1.msra.mxu0 %v241
    %285 = vmatprep.subr.mxu0 0.0
    %286 = vmatpush1.msra.mxu0 0.0
    %287 = vmatprep.subr.mxu0 0.0
    %288 = vmatpush1.msra.mxu0 0.0
    %289 = vmatprep.subr.mxu0 0.0
    %290 = vmatpush1.msra.mxu0 0.0
    %291 = vmatprep.subr.mxu0 0.0
    %292 = vmatpush1.msra.mxu0 0.0
    %293 = vmatprep.subr.mxu0 0.0
    %294 = vmatpush1.msra.mxu0 0.0
    %295 = vmatprep.subr.mxu0 0.0
    %296 = vmatpush1.msra.mxu0 0.0
    %297 = vmatprep.subr.mxu0 0.0
    %298 = vmatpush1.msra.mxu0 0.0
    %299 = vmatprep.subr.mxu0 0.0
    %300 = vmatpush1.msra.mxu0 0.0
    %301 = vmatprep.subr.mxu0 0.0
    %302 = vmatpush1.msra.mxu0 0.0
    %303 = vmatprep.subr.mxu0 0.0
    %304 = vmatpush1.msra.mxu0 0.0
    %305 = vmatprep.subr.mxu0 0.0
    %306 = vmatpush1.msra.mxu0 0.0
    %307 = vmatprep.subr.mxu0 0.0
    %308 = vmatpush1.msra.mxu0 0.0
    %309 = vmatprep.subr.mxu0 0.0
    %310 = vmatpush1.msra.mxu0 0.0
    %311 = vmatprep.subr.mxu0 0.0
    %312 = vmatpush1.msra.mxu0 0.0
    %313 = vmatprep.subr.mxu0 0.0
    %314 = vmatpush1.msra.mxu0 0.0
    %315 = vmatprep.subr.mxu0 0.0
    %316 = vmatpush1.msra.mxu0 0.0
    %317 = vmatprep.subr.mxu0 0.0
    %318 = vmatpush1.msra.mxu0 0.0
    %319 = vmatprep.subr.mxu0 0.0
    %320 = vmatpush1.msra.mxu0 0.0
    %321 = vmatprep.subr.mxu0 0.0
    %322 = vmatpush1.msra.mxu0 0.0
    %323 = vmatprep.subr.mxu0 0.0
    %324 = vmatpush1.msra.mxu0 0.0
    %325 = vmatprep.subr.mxu0 0.0
    %326 = vmatpush1.msra.mxu0 0.0
    %327 = vmatprep.subr.mxu0 0.0
    %328 = vmatpush1.msra.mxu0 0.0
    %329 = vmatprep.subr.mxu0 0.0
    %330 = vmatpush1.msra.mxu0 0.0
    %331 = vmatprep.subr.mxu0 0.0
    %332 = vmatpush1.msra.mxu0 0.0
    %333 = vmatprep.subr.mxu0 0.0
    %334 = vmatpush1.msra.mxu0 0.0
    %335 = vmatprep.subr.mxu0 0.0
    %336 = vmatpush1.msra.mxu0 0.0
    %337 = vmatprep.subr.mxu0 0.0
    %338 = vmatpush1.msra.mxu0 0.0
    %339 = vmatprep.subr.mxu0 0.0
    %340 = vmatpush1.msra.mxu0 0.0
    %341 = vmatprep.subr.mxu0 0.0
    %342 = vmatpush1.msra.mxu0 0.0
    %343 = vmatprep.subr.mxu0 0.0
    %344 = vmatpush1.msra.mxu0 0.0
    %345 = vmatprep.mubr.f32.mxu0 0.0
    %346 = vmatmul.mubr.f32.gmra.mrb[0].mxu0 %v279
    %v347 = vpop.f32.mrb[0].mxu0
    %v348 = vadd.f32 %v277, %v347
    %v349 = vpop.f32.mrb[0].mxu0
    %350 = vdwg.mxu0
    %v351 = vsel %vm211, %v348, 0.0
    %352 = vadd.xlane.f32.xlu0 %v351
    %v353 = vpop.xlane.xlu0 %352
    %v354 = vmul.f32 %v348, %v348
    %v355 = vsel %vm211, %v354, 0.0
    %356 = vadd.xlane.f32.xlu0 %v355
    %v357 = vpop.xlane.xlu0 %356
    %v358 = vmul.f32 %v353, 0.03125
    %v359 = vmul.f32 %v357, 0.03125
    %v360 = vmul.f32 %v358, %v358
    %v361 = vsub.f32 %v359, %v360
    %v362 = vmax.f32 %v361, 0.0
    %v363 = vsub.f32 %v348, %v358
    %v364 = vadd.f32 %v362, 1e-05
    %v365 = vrsqrt.pop %v364
    %v366 = vmul.f32 %v363, %v365
    %v367 = vlaneseq
    %v368 = vshrl.u32 %v367, 7
    %v369 = vsub.s32 0, %v368
    %v370 = vrot.slane %v245, %v369
    %v371 = vmul.f32 %v366, %v370
    %v372 = vlaneseq
    %v373 = vshrl.u32 %v372, 7
    %v374 = vsub.s32 0, %v373
    %v375 = vrot.slane %v246, %v374
    %v376 = vadd.f32 %v371, %v375
    %v377 = vmax.f32 %v376, 0.0
    %v378 = vld [vmem:[#allocation5 + $0xa] sm:$0x1]
    %v379 = vld [vmem:[#allocation5 + $0xb] sm:$0x1]
    %381 = vrot.lane.b32.xlu0 %v377, 32
    %v382 = vpop.permute.xlu0 %381
    %v384 = vsel %vm211, %v238, %v382
    %v385 = vlaneseq
    %v386 = vshrl.u32 %v385, 7
    %v387 = vsub.s32 0, %v386
    %v388 = vrot.slane %v378, %v387
    %v389 = vld [vmem:[%s4] sm:$0xff]
    %v390 = vld [vmem:[%s4 + $0x8] sm:$0xff]
    %v391 = vld [vmem:[%s4 + $0x10] sm:$0xff]
    %v392 = vld [vmem:[%s4 + $0x18] sm:$0xff]
    %v393 = vld [vmem:[%s4 + $0x20] sm:$0xff]
    %v394 = vld [vmem:[%s4 + $0x28] sm:$0xff]
    %v395 = vld [vmem:[%s4 + $0x30] sm:$0xff]
    %v396 = vld [vmem:[%s4 + $0x38] sm:$0xff]
    %vm397 = vcmask 523264
    %v399 = vsel %vm397, %v384, 0
    %401 = vmatprep.subr.mxu0 0.0
    %402 = vmatpush1.msra.mxu0 %v389
    %403 = vmatprep.subr.mxu0 0.0
    %404 = vmatpush1.msra.mxu0 %v390
    %405 = vmatprep.subr.mxu0 0.0
    %406 = vmatpush1.msra.mxu0 %v391
    %407 = vmatprep.subr.mxu0 0.0
    %408 = vmatpush1.msra.mxu0 %v392
    %409 = vmatprep.subr.mxu0 0.0
    %410 = vmatpush1.msra.mxu0 %v393
    %411 = vmatprep.subr.mxu0 0.0
    %412 = vmatpush1.msra.mxu0 %v394
    %413 = vmatprep.subr.mxu0 0.0
    %414 = vmatpush1.msra.mxu0 %v395
    %415 = vmatprep.subr.mxu0 0.0
    %416 = vmatpush1.msra.mxu0 %v396
    %417 = vmatprep.subr.mxu0 0.0
    %418 = vmatpush1.msra.mxu0 0.0
    %419 = vmatprep.subr.mxu0 0.0
    %420 = vmatpush1.msra.mxu0 0.0
    %421 = vmatprep.subr.mxu0 0.0
    %422 = vmatpush1.msra.mxu0 0.0
    %423 = vmatprep.subr.mxu0 0.0
    %424 = vmatpush1.msra.mxu0 0.0
    %425 = vmatprep.subr.mxu0 0.0
    %426 = vmatpush1.msra.mxu0 0.0
    %427 = vmatprep.subr.mxu0 0.0
    %428 = vmatpush1.msra.mxu0 0.0
    %429 = vmatprep.subr.mxu0 0.0
    %430 = vmatpush1.msra.mxu0 0.0
    %431 = vmatprep.subr.mxu0 0.0
    %432 = vmatpush1.msra.mxu0 0.0
    %433 = vmatprep.subr.mxu0 0.0
    %434 = vmatpush1.msra.mxu0 0.0
    %435 = vmatprep.subr.mxu0 0.0
    %436 = vmatpush1.msra.mxu0 0.0
    %437 = vmatprep.subr.mxu0 0.0
    %438 = vmatpush1.msra.mxu0 0.0
    %439 = vmatprep.subr.mxu0 0.0
    %440 = vmatpush1.msra.mxu0 0.0
    %441 = vmatprep.subr.mxu0 0.0
    %442 = vmatpush1.msra.mxu0 0.0
    %443 = vmatprep.subr.mxu0 0.0
    %444 = vmatpush1.msra.mxu0 0.0
    %445 = vmatprep.subr.mxu0 0.0
    %446 = vmatpush1.msra.mxu0 0.0
    %447 = vmatprep.subr.mxu0 0.0
    %448 = vmatpush1.msra.mxu0 0.0
    %449 = vmatprep.subr.mxu0 0.0
    %450 = vmatpush1.msra.mxu0 0.0
    %451 = vmatprep.subr.mxu0 0.0
    %452 = vmatpush1.msra.mxu0 0.0
    %453 = vmatprep.subr.mxu0 0.0
    %454 = vmatpush1.msra.mxu0 0.0
    %455 = vmatprep.subr.mxu0 0.0
    %456 = vmatpush1.msra.mxu0 0.0
    %457 = vmatprep.subr.mxu0 0.0
    %458 = vmatpush1.msra.mxu0 0.0
    %459 = vmatprep.subr.mxu0 0.0
    %460 = vmatpush1.msra.mxu0 0.0
    %461 = vmatprep.subr.mxu0 0.0
    %462 = vmatpush1.msra.mxu0 0.0
    %463 = vmatprep.subr.mxu0 0.0
    %464 = vmatpush1.msra.mxu0 0.0
    %465 = vmatprep.mubr.f32.mxu0 0.0
    %466 = vmatmul.mubr.f32.gmra.mrb[0].mxu0 %v399
    %v467 = vpop.f32.mrb[0].mxu0
    %v468 = vadd.f32 %v388, %v467
    %v469 = vpop.f32.mrb[0].mxu0
    %470 = vdwg.mxu0
    %v471 = vmax.f32 %v468, 0.0
    %v473 = vsel %vm397, %v471, 0
    %475 = vmatprep.subr.mxu0 0.0
    %476 = vmatpush1.msra.mxu0 %v389
    %477 = vmatprep.subr.mxu0 0.0
    %478 = vmatpush1.msra.mxu0 %v390
    %479 = vmatprep.subr.mxu0 0.0
    %480 = vmatpush1.msra.mxu0 %v391
    %481 = vmatprep.subr.mxu0 0.0
    %482 = vmatpush1.msra.mxu0 %v392
    %483 = vmatprep.subr.mxu0 0.0
    %484 = vmatpush1.msra.mxu0 %v393
    %485 = vmatprep.subr.mxu0 0.0
    %486 = vmatpush1.msra.mxu0 %v394
    %487 = vmatprep.subr.mxu0 0.0
    %488 = vmatpush1.msra.mxu0 %v395
    %489 = vmatprep.subr.mxu0 0.0
    %490 = vmatpush1.msra.mxu0 %v396
    %491 = vmatprep.subr.mxu0 0.0
    %492 = vmatpush1.msra.mxu0 0.0
    %493 = vmatprep.subr.mxu0 0.0
    %494 = vmatpush1.msra.mxu0 0.0
    %495 = vmatprep.subr.mxu0 0.0
    %496 = vmatpush1.msra.mxu0 0.0
    %497 = vmatprep.subr.mxu0 0.0
    %498 = vmatpush1.msra.mxu0 0.0
    %499 = vmatprep.subr.mxu0 0.0
    %500 = vmatpush1.msra.mxu0 0.0
    %501 = vmatprep.subr.mxu0 0.0
    %502 = vmatpush1.msra.mxu0 0.0
    %503 = vmatprep.subr.mxu0 0.0
    %504 = vmatpush1.msra.mxu0 0.0
    %505 = vmatprep.subr.mxu0 0.0
    %506 = vmatpush1.msra.mxu0 0.0
    %507 = vmatprep.subr.mxu0 0.0
    %508 = vmatpush1.msra.mxu0 0.0
    %509 = vmatprep.subr.mxu0 0.0
    %510 = vmatpush1.msra.mxu0 0.0
    %511 = vmatprep.subr.mxu0 0.0
    %512 = vmatpush1.msra.mxu0 0.0
    %513 = vmatprep.subr.mxu0 0.0
    %514 = vmatpush1.msra.mxu0 0.0
    %515 = vmatprep.subr.mxu0 0.0
    %516 = vmatpush1.msra.mxu0 0.0
    %517 = vmatprep.subr.mxu0 0.0
    %518 = vmatpush1.msra.mxu0 0.0
    %519 = vmatprep.subr.mxu0 0.0
    %520 = vmatpush1.msra.mxu0 0.0
    %521 = vmatprep.subr.mxu0 0.0
    %522 = vmatpush1.msra.mxu0 0.0
    %523 = vmatprep.subr.mxu0 0.0
    %524 = vmatpush1.msra.mxu0 0.0
    %525 = vmatprep.subr.mxu0 0.0
    %526 = vmatpush1.msra.mxu0 0.0
    %527 = vmatprep.subr.mxu0 0.0
    %528 = vmatpush1.msra.mxu0 0.0
    %529 = vmatprep.subr.mxu0 0.0
    %530 = vmatpush1.msra.mxu0 0.0
    %531 = vmatprep.subr.mxu0 0.0
    %532 = vmatpush1.msra.mxu0 0.0
    %533 = vmatprep.subr.mxu0 0.0
    %534 = vmatpush1.msra.mxu0 0.0
    %535 = vmatprep.subr.mxu0 0.0
    %536 = vmatpush1.msra.mxu0 0.0
    %537 = vmatprep.subr.mxu0 0.0
    %538 = vmatpush1.msra.mxu0 0.0
    %539 = vmatprep.mubr.f32.mxu0 0.0
    %540 = vmatmul.mubr.f32.gmra.mrb[0].mxu0 %v473
    %v541 = vpop.f32.mrb[0].mxu0
    %v542 = vadd.f32 %v388, %v541
    %v543 = vpop.f32.mrb[0].mxu0
    %544 = vdwg.mxu0
    %v545 = vmax.f32 %v542, 0.0
    %v546 = vld [vmem:[%s5] sm:$0xff]
    %v547 = vld [vmem:[%s5 + $0x8] sm:$0xff]
    %v548 = vld [vmem:[%s5 + $0x10] sm:$0xff]
    %v549 = vld [vmem:[%s5 + $0x18] sm:$0xff]
    %v550 = vld [vmem:[%s5 + $0x20] sm:$0xff]
    %v551 = vld [vmem:[%s5 + $0x28] sm:$0xff]
    %v552 = vld [vmem:[%s5 + $0x30] sm:$0xff]
    %v553 = vld [vmem:[%s5 + $0x38] sm:$0xff]
    %v554 = vlaneseq
    %v555 = vshrl.u32 %v554, 7
    %v556 = vsub.s32 0, %v555
    %v557 = vrot.slane %v379, %v556
    %v559 = vsel %vm397, %v545, 0
    %561 = vmatprep.subr.mxu0 0.0
    %562 = vmatpush1.msra.mxu0 %v546
    %563 = vmatprep.subr.mxu0 0.0
    %564 = vmatpush1.msra.mxu0 %v547
    %565 = vmatprep.subr.mxu0 0.0
    %566 = vmatpush1.msra.mxu0 %v548
    %567 = vmatprep.subr.mxu0 0.0
    %568 = vmatpush1.msra.mxu0 %v549
    %569 = vmatprep.subr.mxu0 0.0
    %570 = vmatpush1.msra.mxu0 %v550
    %571 = vmatprep.subr.mxu0 0.0
    %572 = vmatpush1.msra.mxu0 %v551
    %573 = vmatprep.subr.mxu0 0.0
    %574 = vmatpush1.msra.mxu0 %v552
    %575 = vmatprep.subr.mxu0 0.0
    %576 = vmatpush1.msra.mxu0 %v553
    %577 = vmatprep.subr.mxu0 0.0
    %578 = vmatpush1.msra.mxu0 0.0
    %579 = vmatprep.subr.mxu0 0.0
    %580 = vmatpush1.msra.mxu0 0.0
    %581 = vmatprep.subr.mxu0 0.0
    %582 = vmatpush1.msra.mxu0 0.0
    %583 = vmatprep.subr.mxu0 0.0
    %584 = vmatpush1.msra.mxu0 0.0
    %585 = vmatprep.subr.mxu0 0.0
    %586 = vmatpush1.msra.mxu0 0.0
    %587 = vmatprep.subr.mxu0 0.0
    %588 = vmatpush1.msra.mxu0 0.0
    %589 = vmatprep.subr.mxu0 0.0
    %590 = vmatpush1.msra.mxu0 0.0
    %591 = vmatprep.subr.mxu0 0.0
    %592 = vmatpush1.msra.mxu0 0.0
    %593 = vmatprep.subr.mxu0 0.0
    %594 = vmatpush1.msra.mxu0 0.0
    %595 = vmatprep.subr.mxu0 0.0
    %596 = vmatpush1.msra.mxu0 0.0
    %597 = vmatprep.subr.mxu0 0.0
    %598 = vmatpush1.msra.mxu0 0.0
    %599 = vmatprep.subr.mxu0 0.0
    %600 = vmatpush1.msra.mxu0 0.0
    %601 = vmatprep.subr.mxu0 0.0
    %602 = vmatpush1.msra.mxu0 0.0
    %603 = vmatprep.subr.mxu0 0.0
    %604 = vmatpush1.msra.mxu0 0.0
    %605 = vmatprep.subr.mxu0 0.0
    %606 = vmatpush1.msra.mxu0 0.0
    %607 = vmatprep.subr.mxu0 0.0
    %608 = vmatpush1.msra.mxu0 0.0
    %609 = vmatprep.subr.mxu0 0.0
    %610 = vmatpush1.msra.mxu0 0.0
    %611 = vmatprep.subr.mxu0 0.0
    %612 = vmatpush1.msra.mxu0 0.0
    %613 = vmatprep.subr.mxu0 0.0
    %614 = vmatpush1.msra.mxu0 0.0
    %615 = vmatprep.subr.mxu0 0.0
    %616 = vmatpush1.msra.mxu0 0.0
    %617 = vmatprep.subr.mxu0 0.0
    %618 = vmatpush1.msra.mxu0 0.0
    %619 = vmatprep.subr.mxu0 0.0
    %620 = vmatpush1.msra.mxu0 0.0
    %621 = vmatprep.subr.mxu0 0.0
    %622 = vmatpush1.msra.mxu0 0.0
    %623 = vmatprep.subr.mxu0 0.0
    %624 = vmatpush1.msra.mxu0 0.0
    %625 = vmatprep.mubr.f32.mxu0 0.0
    %626 = vmatmul.mubr.f32.gmra.mrb[0].mxu0 %v559
    %v627 = vpop.f32.mrb[0].mxu0
    %v628 = vadd.f32 %v557, %v627
    %v629 = vpop.f32.mrb[0].mxu0
    %630 = vdwg.mxu0
    %v631 = vmax.f32 %v628, 0.0
    %v632 = vld [vmem:[#allocation5 + $0xc] sm:$0x1]
    %v633 = vld [vmem:[#allocation5 + $0xd] sm:$0x1]
    %v634 = vld [vmem:[#allocation5 + $0xe] sm:$0x1]
    %v635 = vld [vmem:[#allocation5 + $0xf] sm:$0x1]
    %v636 = vld [vmem:[#allocation5 + $0x10] sm:$0x1]
    %v637 = vld [vmem:[#allocation7] sm:$0xff]
    %v638 = vld [vmem:[#allocation7 + $0x8] sm:$0xff]
    %v639 = vld [vmem:[#allocation7 + $0x10] sm:$0xff]
    %v640 = vld [vmem:[#allocation7 + $0x18] sm:$0xff]
    %v641 = vlaneseq
    %v642 = vshrl.u32 %v641, 7
    %v643 = vsub.s32 0, %v642
    %v644 = vrot.slane %v632, %v643
    %v646 = vsel %vm211, %v631, 0
    %648 = vmatprep.subr.mxu0 0.0
    %649 = vmatpush1.msra.mxu0 %v637
    %650 = vmatprep.subr.mxu0 0.0
    %651 = vmatpush1.msra.mxu0 %v638
    %652 = vmatprep.subr.mxu0 0.0
    %653 = vmatpush1.msra.mxu0 %v639
    %654 = vmatprep.subr.mxu0 0.0
    %655 = vmatpush1.msra.mxu0 %v640
    %656 = vmatprep.subr.mxu0 0.0
    %657 = vmatpush1.msra.mxu0 0.0
    %658 = vmatprep.subr.mxu0 0.0
    %659 = vmatpush1.msra.mxu0 0.0
    %660 = vmatprep.subr.mxu0 0.0
    %661 = vmatpush1.msra.mxu0 0.0
    %662 = vmatprep.subr.mxu0 0.0
    %663 = vmatpush1.msra.mxu0 0.0
    %664 = vmatprep.subr.mxu0 0.0
    %665 = vmatpush1.msra.mxu0 0.0
    %666 = vmatprep.subr.mxu0 0.0
    %667 = vmatpush1.msra.mxu0 0.0
    %668 = vmatprep.subr.mxu0 0.0
    %669 = vmatpush1.msra.mxu0 0.0
    %670 = vmatprep.subr.mxu0 0.0
    %671 = vmatpush1.msra.mxu0 0.0
    %672 = vmatprep.subr.mxu0 0.0
    %673 = vmatpush1.msra.mxu0 0.0
    %674 = vmatprep.subr.mxu0 0.0
    %675 = vmatpush1.msra.mxu0 0.0
    %676 = vmatprep.subr.mxu0 0.0
    %677 = vmatpush1.msra.mxu0 0.0
    %678 = vmatprep.subr.mxu0 0.0
    %679 = vmatpush1.msra.mxu0 0.0
    %680 = vmatprep.subr.mxu0 0.0
    %681 = vmatpush1.msra.mxu0 0.0
    %682 = vmatprep.subr.mxu0 0.0
    %683 = vmatpush1.msra.mxu0 0.0
    %684 = vmatprep.subr.mxu0 0.0
    %685 = vmatpush1.msra.mxu0 0.0
    %686 = vmatprep.subr.mxu0 0.0
    %687 = vmatpush1.msra.mxu0 0.0
    %688 = vmatprep.subr.mxu0 0.0
    %689 = vmatpush1.msra.mxu0 0.0
    %690 = vmatprep.subr.mxu0 0.0
    %691 = vmatpush1.msra.mxu0 0.0
    %692 = vmatprep.subr.mxu0 0.0
    %693 = vmatpush1.msra.mxu0 0.0
    %694 = vmatprep.subr.mxu0 0.0
    %695 = vmatpush1.msra.mxu0 0.0
    %696 = vmatprep.subr.mxu0 0.0
    %697 = vmatpush1.msra.mxu0 0.0
    %698 = vmatprep.subr.mxu0 0.0
    %699 = vmatpush1.msra.mxu0 0.0
    %700 = vmatprep.subr.mxu0 0.0
    %701 = vmatpush1.msra.mxu0 0.0
    %702 = vmatprep.subr.mxu0 0.0
    %703 = vmatpush1.msra.mxu0 0.0
    %704 = vmatprep.subr.mxu0 0.0
    %705 = vmatpush1.msra.mxu0 0.0
    %706 = vmatprep.subr.mxu0 0.0
    %707 = vmatpush1.msra.mxu0 0.0
    %708 = vmatprep.subr.mxu0 0.0
    %709 = vmatpush1.msra.mxu0 0.0
    %710 = vmatprep.subr.mxu0 0.0
    %711 = vmatpush1.msra.mxu0 0.0
    %712 = vmatprep.mubr.f32.mxu0 0.0
    %713 = vmatmul.mubr.f32.gmra.mrb[0].mxu0 %v646
    %v714 = vpop.f32.mrb[0].mxu0
    %v715 = vadd.f32 %v644, %v714
    %v716 = vpop.f32.mrb[0].mxu0
    %717 = vdwg.mxu0
    %v718 = vsel %vm211, %v715, 0.0
    %719 = vadd.xlane.f32.xlu0 %v718
    %v720 = vpop.xlane.xlu0 %719
    %v721 = vmul.f32 %v715, %v715
    %v722 = vsel %vm211, %v721, 0.0
    %723 = vadd.xlane.f32.xlu0 %v722
    %v724 = vpop.xlane.xlu0 %723
    %v725 = vmul.f32 %v720, 0.03125
    %v726 = vmul.f32 %v724, 0.03125
    %v727 = vmul.f32 %v725, %v725
    %v728 = vsub.f32 %v726, %v727
    %v729 = vmax.f32 %v728, 0.0
    %v730 = vsub.f32 %v715, %v725
    %v731 = vadd.f32 %v729, 1e-05
    %v732 = vrsqrt.pop %v731
    %v733 = vmul.f32 %v730, %v732
    %v734 = vlaneseq
    %v735 = vshrl.u32 %v734, 7
    %v736 = vsub.s32 0, %v735
    %v737 = vrot.slane %v633, %v736
    %v738 = vmul.f32 %v733, %v737
    %v739 = vlaneseq
    %v740 = vshrl.u32 %v739, 7
    %v741 = vsub.s32 0, %v740
    %v742 = vrot.slane %v634, %v741
    %v743 = vadd.f32 %v738, %v742
    %v744 = vmax.f32 %v743, 0.0
    %v745 = vlaneseq
    %v746 = vshrl.u32 %v745, 7
    %v747 = vsub.s32 0, %v746
    %v748 = vrot.slane %v635, %v747
    %v749 = vld [vmem:[#allocation8] sm:$0xff]
    %v750 = vld [vmem:[#allocation8 + $0x8] sm:$0xff]
    %v751 = vld [vmem:[#allocation8 + $0x10] sm:$0xff]
    %v752 = vld [vmem:[#allocation8 + $0x18] sm:$0xff]
    %v754 = vsel %vm211, %v744, 0
    %756 = vmatprep.subr.mxu0 0.0
    %757 = vmatpush1.msra.mxu0 %v749
    %758 = vmatprep.subr.mxu0 0.0
    %759 = vmatpush1.msra.mxu0 %v750
    %760 = vmatprep.subr.mxu0 0.0
    %761 = vmatpush1.msra.mxu0 %v751
    %762 = vmatprep.subr.mxu0 0.0
    %763 = vmatpush1.msra.mxu0 %v752
    %764 = vmatprep.subr.mxu0 0.0
    %765 = vmatpush1.msra.mxu0 0.0
    %766 = vmatprep.subr.mxu0 0.0
    %767 = vmatpush1.msra.mxu0 0.0
    %768 = vmatprep.subr.mxu0 0.0
    %769 = vmatpush1.msra.mxu0 0.0
    %770 = vmatprep.subr.mxu0 0.0
    %771 = vmatpush1.msra.mxu0 0.0
    %772 = vmatprep.subr.mxu0 0.0
    %773 = vmatpush1.msra.mxu0 0.0
    %774 = vmatprep.subr.mxu0 0.0
    %775 = vmatpush1.msra.mxu0 0.0
    %776 = vmatprep.subr.mxu0 0.0
    %777 = vmatpush1.msra.mxu0 0.0
    %778 = vmatprep.subr.mxu0 0.0
    %779 = vmatpush1.msra.mxu0 0.0
    %780 = vmatprep.subr.mxu0 0.0
    %781 = vmatpush1.msra.mxu0 0.0
    %782 = vmatprep.subr.mxu0 0.0
    %783 = vmatpush1.msra.mxu0 0.0
    %784 = vmatprep.subr.mxu0 0.0
    %785 = vmatpush1.msra.mxu0 0.0
    %786 = vmatprep.subr.mxu0 0.0
    %787 = vmatpush1.msra.mxu0 0.0
    %788 = vmatprep.subr.mxu0 0.0
    %789 = vmatpush1.msra.mxu0 0.0
    %790 = vmatprep.subr.mxu0 0.0
    %791 = vmatpush1.msra.mxu0 0.0
    %792 = vmatprep.subr.mxu0 0.0
    %793 = vmatpush1.msra.mxu0 0.0
    %794 = vmatprep.subr.mxu0 0.0
    %795 = vmatpush1.msra.mxu0 0.0
    %796 = vmatprep.subr.mxu0 0.0
    %797 = vmatpush1.msra.mxu0 0.0
    %798 = vmatprep.subr.mxu0 0.0
    %799 = vmatpush1.msra.mxu0 0.0
    %800 = vmatprep.subr.mxu0 0.0
    %801 = vmatpush1.msra.mxu0 0.0
    %802 = vmatprep.subr.mxu0 0.0
    %803 = vmatpush1.msra.mxu0 0.0
    %804 = vmatprep.subr.mxu0 0.0
    %805 = vmatpush1.msra.mxu0 0.0
    %806 = vmatprep.subr.mxu0 0.0
    %807 = vmatpush1.msra.mxu0 0.0
    %808 = vmatprep.subr.mxu0 0.0
    %809 = vmatpush1.msra.mxu0 0.0
    %810 = vmatprep.subr.mxu0 0.0
    %811 = vmatpush1.msra.mxu0 0.0
    %812 = vmatprep.subr.mxu0 0.0
    %813 = vmatpush1.msra.mxu0 0.0
    %814 = vmatprep.subr.mxu0 0.0
    %815 = vmatpush1.msra.mxu0 0.0
    %816 = vmatprep.subr.mxu0 0.0
    %817 = vmatpush1.msra.mxu0 0.0
    %818 = vmatprep.subr.mxu0 0.0
    %819 = vmatpush1.msra.mxu0 0.0
    %820 = vmatprep.mubr.f32.mxu0 0.0
    %821 = vmatmul.mubr.f32.gmra.mrb[0].mxu0 %v754
    %v822 = vpop.f32.mrb[0].mxu0
    %v823 = vadd.f32 %v748, %v822
    %v824 = vpop.f32.mrb[0].mxu0
    %825 = vdwg.mxu0
    %v826 = vmax.f32 %v823, 0.0
    %v828 = vsel %vm211, %v826, 0
    %830 = vmatprep.subr.mxu0 0.0
    %831 = vmatpush1.msra.mxu0 %v749
    %832 = vmatprep.subr.mxu0 0.0
    %833 = vmatpush1.msra.mxu0 %v750
    %834 = vmatprep.subr.mxu0 0.0
    %835 = vmatpush1.msra.mxu0 %v751
    %836 = vmatprep.subr.mxu0 0.0
    %837 = vmatpush1.msra.mxu0 %v752
    %838 = vmatprep.subr.mxu0 0.0
    %839 = vmatpush1.msra.mxu0 0.0
    %840 = vmatprep.subr.mxu0 0.0
    %841 = vmatpush1.msra.mxu0 0.0
    %842 = vmatprep.subr.mxu0 0.0
    %843 = vmatpush1.msra.mxu0 0.0
    %844 = vmatprep.subr.mxu0 0.0
    %845 = vmatpush1.msra.mxu0 0.0
    %846 = vmatprep.subr.mxu0 0.0
    %847 = vmatpush1.msra.mxu0 0.0
    %848 = vmatprep.subr.mxu0 0.0
    %849 = vmatpush1.msra.mxu0 0.0
    %850 = vmatprep.subr.mxu0 0.0
    %851 = vmatpush1.msra.mxu0 0.0
    %852 = vmatprep.subr.mxu0 0.0
    %853 = vmatpush1.msra.mxu0 0.0
    %854 = vmatprep.subr.mxu0 0.0
    %855 = vmatpush1.msra.mxu0 0.0
    %856 = vmatprep.subr.mxu0 0.0
    %857 = vmatpush1.msra.mxu0 0.0
    %858 = vmatprep.subr.mxu0 0.0
    %859 = vmatpush1.msra.mxu0 0.0
    %860 = vmatprep.subr.mxu0 0.0
    %861 = vmatpush1.msra.mxu0 0.0
    %862 = vmatprep.subr.mxu0 0.0
    %863 = vmatpush1.msra.mxu0 0.0
    %864 = vmatprep.subr.mxu0 0.0
    %865 = vmatpush1.msra.mxu0 0.0
    %866 = vmatprep.subr.mxu0 0.0
    %867 = vmatpush1.msra.mxu0 0.0
    %868 = vmatprep.subr.mxu0 0.0
    %869 = vmatpush1.msra.mxu0 0.0
    %870 = vmatprep.subr.mxu0 0.0
    %871 = vmatpush1.msra.mxu0 0.0
    %872 = vmatprep.subr.mxu0 0.0
    %873 = vmatpush1.msra.mxu0 0.0
    %874 = vmatprep.subr.mxu0 0.0
    %875 = vmatpush1.msra.mxu0 0.0
    %876 = vmatprep.subr.mxu0 0.0
    %877 = vmatpush1.msra.mxu0 0.0
    %878 = vmatprep.subr.mxu0 0.0
    %879 = vmatpush1.msra.mxu0 0.0
    %880 = vmatprep.subr.mxu0 0.0
    %881 = vmatpush1.msra.mxu0 0.0
    %882 = vmatprep.subr.mxu0 0.0
    %883 = vmatpush1.msra.mxu0 0.0
    %884 = vmatprep.subr.mxu0 0.0
    %885 = vmatpush1.msra.mxu0 0.0
    %886 = vmatprep.subr.mxu0 0.0
    %887 = vmatpush1.msra.mxu0 0.0
    %888 = vmatprep.subr.mxu0 0.0
    %889 = vmatpush1.msra.mxu0 0.0
    %890 = vmatprep.subr.mxu0 0.0
    %891 = vmatpush1.msra.mxu0 0.0
    %892 = vmatprep.subr.mxu0 0.0
    %893 = vmatpush1.msra.mxu0 0.0
    %894 = vmatprep.mubr.f32.mxu0 0.0
    %895 = vmatmul.mubr.f32.gmra.mrb[0].mxu0 %v828
    %v896 = vpop.f32.mrb[0].mxu0
    %v897 = vadd.f32 %v748, %v896
    %v898 = vpop.f32.mrb[0].mxu0
    %899 = vdwg.mxu0
    %v900 = vmax.f32 %v897, 0.0
    %v901 = vld [vmem:[#allocation10] sm:$0xff]
    %v902 = vld [vmem:[#allocation10 + $0x8] sm:$0xff]
    %v903 = vld [vmem:[#allocation10 + $0x10] sm:$0xff]
    %v904 = vld [vmem:[#allocation10 + $0x18] sm:$0xff]
    %v905 = vlaneseq
    %v906 = vshrl.u32 %v905, 7
    %v907 = vsub.s32 0, %v906
    %v908 = vrot.slane %v636, %v907
    %v910 = vsel %vm211, %v900, 0
    %912 = vmatprep.subr.mxu0 0.0
    %913 = vmatpush1.msra.mxu0 %v901
    %914 = vmatprep.subr.mxu0 0.0
    %915 = vmatpush1.msra.mxu0 %v902
    %916 = vmatprep.subr.mxu0 0.0
    %917 = vmatpush1.msra.mxu0 %v903
    %918 = vmatprep.subr.mxu0 0.0
    %919 = vmatpush1.msra.mxu0 %v904
    %920 = vmatprep.subr.mxu0 0.0
    %921 = vmatpush1.msra.mxu0 0.0
    %922 = vmatprep.subr.mxu0 0.0
    %923 = vmatpush1.msra.mxu0 0.0
    %924 = vmatprep.subr.mxu0 0.0
    %925 = vmatpush1.msra.mxu0 0.0
    %926 = vmatprep.subr.mxu0 0.0
    %927 = vmatpush1.msra.mxu0 0.0
    %928 = vmatprep.subr.mxu0 0.0
    %929 = vmatpush1.msra.mxu0 0.0
    %930 = vmatprep.subr.mxu0 0.0
    %931 = vmatpush1.msra.mxu0 0.0
    %932 = vmatprep.subr.mxu0 0.0
    %933 = vmatpush1.msra.mxu0 0.0
    %934 = vmatprep.subr.mxu0 0.0
    %935 = vmatpush1.msra.mxu0 0.0
    %936 = vmatprep.subr.mxu0 0.0
    %937 = vmatpush1.msra.mxu0 0.0
    %938 = vmatprep.subr.mxu0 0.0
    %939 = vmatpush1.msra.mxu0 0.0
    %940 = vmatprep.subr.mxu0 0.0
    %941 = vmatpush1.msra.mxu0 0.0
    %942 = vmatprep.subr.mxu0 0.0
    %943 = vmatpush1.msra.mxu0 0.0
    %944 = vmatprep.subr.mxu0 0.0
    %945 = vmatpush1.msra.mxu0 0.0
    %946 = vmatprep.subr.mxu0 0.0
    %947 = vmatpush1.msra.mxu0 0.0
    %948 = vmatprep.subr.mxu0 0.0
    %949 = vmatpush1.msra.mxu0 0.0
    %950 = vmatprep.subr.mxu0 0.0
    %951 = vmatpush1.msra.mxu0 0.0
    %952 = vmatprep.subr.mxu0 0.0
    %953 = vmatpush1.msra.mxu0 0.0
    %954 = vmatprep.subr.mxu0 0.0
    %955 = vmatpush1.msra.mxu0 0.0
    %956 = vmatprep.subr.mxu0 0.0
    %957 = vmatpush1.msra.mxu0 0.0
    %958 = vmatprep.subr.mxu0 0.0
    %959 = vmatpush1.msra.mxu0 0.0
    %960 = vmatprep.subr.mxu0 0.0
    %961 = vmatpush1.msra.mxu0 0.0
    %962 = vmatprep.subr.mxu0 0.0
    %963 = vmatpush1.msra.mxu0 0.0
    %964 = vmatprep.subr.mxu0 0.0
    %965 = vmatpush1.msra.mxu0 0.0
    %966 = vmatprep.subr.mxu0 0.0
    %967 = vmatpush1.msra.mxu0 0.0
    %968 = vmatprep.subr.mxu0 0.0
    %969 = vmatpush1.msra.mxu0 0.0
    %970 = vmatprep.subr.mxu0 0.0
    %971 = vmatpush1.msra.mxu0 0.0
    %972 = vmatprep.subr.mxu0 0.0
    %973 = vmatpush1.msra.mxu0 0.0
    %974 = vmatprep.subr.mxu0 0.0
    %975 = vmatpush1.msra.mxu0 0.0
    %976 = vmatprep.mubr.f32.mxu0 0.0
    %977 = vmatmul.mubr.f32.gmra.mrb[0].mxu0 %v910
    %v978 = vpop.f32.mrb[0].mxu0
    %v979 = vadd.f32 %v908, %v978
    %v980 = vpop.f32.mrb[0].mxu0
    %981 = vdwg.mxu0
    %v982 = vxor.u32 %v979, 2147483648
    %v983 = vmul.f32 %v982, 1.442695
    %v984 = vpow.pop %v983
    %v985 = vadd.f32 %v984, 1.0
    %v986 = vrcp.pop %v985
    %v987 = vmul.f32 1.0, %v986
    %988 = vst [vmem:[#allocation11] sm:$0xff] %v987
    // Predicated region
    $region58: #{tpu_custom_call.1} parent=1 // pred_check
      _
    $region59: #{tpu_custom_call.1} parent=1 // pred_check_branch
      %990 = sbr.rel (0) target = $region61
    $region60: #{tpu_custom_call.1} parent=1 // pred_region
      %s992 = ssub.s32 128, 128
      %993 = vsyncadd [#allocation4], %s992
      %s995 = sshll.u32 [#allocation11], 4
      %s996 = int_to_ptr.vmem [resolvable:$true] %s995
      %998 = dma.vmem_to_hbm [thread:$0]  %s996, 128, %s9, [#allocation4]
    $region61: #{tpu_custom_call.1} parent=1 // pred_fallthru
      _
    // Predicated region
    $region62: #{tpu_custom_call.1} parent=1 // pred_check
      _
    $region63: #{tpu_custom_call.1} parent=1 // pred_check_branch
      %1000 = sbr.rel (0) target = $region65
    $region64: #{tpu_custom_call.1} parent=1 // pred_region
      %1001 = dma.done [#allocation4], 128
    $region65: #{tpu_custom_call.1} parent=1 // pred_fallthru
      _
    %1002 = vsyncpa [#allocation3], 1
    %1003 = vsyncpa [#allocation6], 1
    %1004 = vsyncpa [#allocation9], 1
    %1005 = vsyncpa [#allocation4], 1

</llo_original>
